<compile_context>
chip_gen: v7x
topology: tpu7x:2x2x1
jax: 0.10.0
libtpu: 0.0.40
codegen_flags: <defaults>
</compile_context>

<pallas_src>
import functools

import jax
import jax.numpy as jnp
from jax import lax
from jax.experimental import pallas as pl
from jax.experimental.pallas import tpu as pltpu

KH = KW = 3                  # nn.Conv2d(kernel_size=3, stride=1, padding=1, bias=False)
PAD = 1
EPS = 1e-5                   # nn.BatchNorm2d default eps
NEG_SLOPE = 0.1015625        # DPU_COMPATIBLE LeakyReLU slope
LANES = 128                  # TPU lane width
MATMUL_DTYPE = jnp.bfloat16  # MXU operand + conv-intermediate dtype; jnp.float32 -> ~1e-6 match
VMEM_LIMIT = 64 * 1024 * 1024


def _conv_stats_kernel(x_ref, halo_ref, w_ref, conv_ref, stats_ref, *, h_real, mask_rows):
    """Phase 1: 3x3 conv for one (batch, row-tile) via ONE im2col MXU matmul,
    plus per-tile per-channel BN partial statistics.

    x_ref:     (1, TH, W+2, Cin)      bf16 center rows (W zero-padded)
    halo_ref:  (1, 1, 2, W+2, Cin)    bf16 row above / row below this tile
    w_ref:     (KH*KW*Cin, COUT_P)    bf16 resident weights (constant index_map)
    conv_ref:  (1, TH, W, COUT_P)     bf16 conv tile (lane-dense)
    stats_ref: (1, 1, 2, COUT_P)      f32 [channel_sum ; channel_sum_sq]
    """
    th = conv_ref.shape[1]
    wd = conv_ref.shape[2]
    coutp = conv_ref.shape[3]
    cin = x_ref.shape[-1]

    hal = halo_ref[0, 0]                                       # (2, W+2, Cin)
    x_full = jnp.concatenate([hal[0:1], x_ref[0], hal[1:2]], axis=0)   # (TH+2, W+2, Cin)

    # im2col: 9 shifted windows concatenated along channels -> single MXU matmul
    # with K = KH*KW*Cin and f32 accumulation.
    # TODO(synk): for Cin << 128 the (..., Cin) lane layout is sparse; packing
    # channels (or fusing W into the lane dim) would cut patches/x VMEM further.
    taps = []
    for kh in range(KH):                                       # static 3x3 taps
        for kw in range(KW):
            taps.append(x_full[kh:kh + th, kw:kw + wd, :])
    patches = jnp.concatenate(taps, axis=-1).reshape(th * wd, KH * KW * cin)
    acc = jnp.dot(patches, w_ref[...], preferred_element_type=jnp.float32)  # (TH*W, COUT_P)

    conv_ref[...] = acc.reshape(1, th, wd, coutp).astype(conv_ref.dtype)

    if mask_rows:  # exclude zero-padded H rows from the BN statistics
        i = pl.program_id(1)
        row = lax.broadcasted_iota(jnp.int32, (th * wd, 1), 0) // wd
        acc = jnp.where(i * th + row < h_real, acc, 0.0)
    s = jnp.sum(acc, axis=0, keepdims=True)                    # (1, COUT_P)
    ss = jnp.sum(acc * acc, axis=0, keepdims=True)             # (1, COUT_P)
    stats_ref[...] = jnp.concatenate([s, ss], axis=0).reshape(1, 1, 2, coutp)


def _bn_act_kernel(conv_ref, scale_ref, shift_ref, o_ref):
    """Phase 2: y = conv*scale + shift ; LeakyReLU.  Pure streaming, lane-dense."""
    y = conv_ref[...].astype(jnp.float32) * scale_ref[...] + shift_ref[...]
    o_ref[...] = jnp.where(y >= 0, y, y * NEG_SLOPE)


def _largest_divisor_leq(x, cap):
    cap = max(1, min(cap, x))
    for d in range(cap, 0, -1):
        if x % d == 0:
            return d
    return 1


@functools.partial(jax.jit, static_argnames=("tile_h",))
def cnn_block(x_nchw, w_oihw, gamma, beta, *, tile_h=None):
    """CNNBlock forward.  x_nchw: (N, Cin, H, W); w_oihw: (Cout, Cin, 3, 3)
    -> (N, Cout, H, W) f32, matching training-mode BatchNorm semantics."""
    n, cin, h, wd = x_nchw.shape
    cout = w_oihw.shape[0]
    # Lane-dense Cout padding; 256-multiple for large Cout fills the v6e/v7x MXU N dim.
    coutp = LANES if cout <= LANES else -(-cout // 256) * 256

    # ---- phase-1 tile height: target M = tile_h*W >= 512 and ~1 MiB conv tile,
    #      capped so double-buffered x/conv tiles + im2col patches + f32 acc stay
    #      well inside v7x's 64 MiB VMEM (v5e/v6e have 128 MiB -> same cap is safe).
    if tile_h is None:
        target_rows = max(pl.cdiv(512, wd), pl.cdiv(1 << 20, max(wd * coutp * 2, 1)))
        per_row_bytes = ((wd + 2 * PAD) * cin * 2 + wd * coutp * 2
                         + wd * KH * KW * cin * 2 + wd * coutp * 4)
        cap_rows = max(8, (8 << 20) // max(per_row_bytes, 1))
        tile_h = min(max(h, 1), target_rows, cap_rows)
        tile_h = max(tile_h, min(h, 8))
    tile_h = max(1, min(tile_h, h))
    nt = pl.cdiv(h, tile_h)
    hp = nt * tile_h                      # H padded up; padded rows masked from BN stats
    mask_rows = hp != h

    # ---- layout glue (fused under this jit): NCHW->NHWC, pad W by 1 / H to hp,
    #      bf16 cast.  No overlapping-window staging copy: disjoint row tiles are
    #      read directly; a tiny halo array supplies the 1-row top/bottom halos.
    x_nhwc = jnp.transpose(x_nchw, (0, 2, 3, 1))
    x_wpad = jnp.pad(x_nhwc, ((0, 0), (0, hp - h), (PAD, PAD), (0, 0))).astype(MATMUL_DTYPE)
    zrow = jnp.zeros((n, wd + 2 * PAD, cin), MATMUL_DTYPE)
    tops = [zrow] + [x_wpad[:, i * tile_h - 1] for i in range(1, nt)]
    bots = [x_wpad[:, (i + 1) * tile_h] for i in range(nt - 1)] + [zrow]
    halos = jnp.stack([jnp.stack([t, b], axis=1) for t, b in zip(tops, bots)],
                      axis=1)                                  # (N, nt, 2, W+2, Cin)

    # Weights: OIHW -> (KH*KW*Cin, Cout), Cout padded to lanes, bf16, resident.
    w_mat = jnp.transpose(w_oihw, (2, 3, 1, 0)).reshape(KH * KW * cin, cout)
    w_mat = jnp.pad(w_mat, ((0, 0), (0, coutp - cout))).astype(MATMUL_DTYPE)

    cparams1 = pltpu.CompilerParams(
        dimension_semantics=("parallel", "parallel"),
        vmem_limit_bytes=VMEM_LIMIT,
    )

    conv_p, stats = pl.pallas_call(
        functools.partial(_conv_stats_kernel, h_real=h, mask_rows=mask_rows),
        grid=(n, nt),
        in_specs=[
            pl.BlockSpec((1, tile_h, wd + 2 * PAD, cin), lambda b, i: (b, i, 0, 0)),
            pl.BlockSpec((1, 1, 2, wd + 2 * PAD, cin), lambda b, i: (b, i, 0, 0, 0)),
            pl.BlockSpec((KH * KW * cin, coutp), lambda b, i: (0, 0)),   # resident
        ],
        out_specs=[
            pl.BlockSpec((1, tile_h, wd, coutp), lambda b, i: (b, i, 0, 0)),
            pl.BlockSpec((1, 1, 2, coutp), lambda b, i: (b, i, 0, 0)),
        ],
        out_shape=[
            jax.ShapeDtypeStruct((n, hp, wd, coutp), MATMUL_DTYPE),   # bf16 intermediate
            jax.ShapeDtypeStruct((n, nt, 2, coutp), jnp.float32),
        ],
        compiler_params=cparams1,
    )(x_wpad, halos, w_mat)

    # ---- fold BN (training-mode batch stats) into one per-channel scale/shift.
    count = n * h * wd
    ch_sum = jnp.sum(stats[:, :, 0, :cout], axis=(0, 1))
    ch_sumsq = jnp.sum(stats[:, :, 1, :cout], axis=(0, 1))
    mean = ch_sum / count
    # TODO(synk): E[x^2]-E[x]^2 can cancel for very large N*H*W / large means; a
    # shifted two-pass reduction would be more robust at scale.
    var = jnp.maximum(ch_sumsq / count - mean * mean, 0.0)   # biased var (PyTorch norm)
    scale = gamma * lax.rsqrt(var + EPS)
    shift = beta - mean * scale
    scale_p = jnp.zeros((1, 1, coutp), jnp.float32).at[0, 0, :cout].set(scale)
    shift_p = jnp.zeros((1, 1, coutp), jnp.float32).at[0, 0, :cout].set(shift)

    # ---- phase 2: streaming scale+shift+LeakyReLU over flattened N*H rows with
    #      its own (larger) row blocks; keep >= 2 grid steps for v7x megacore.
    total_tiles = n * nt
    rows_budget = max(tile_h, (6 << 20) // max(wd * coutp * 6, 1))   # bf16 in + f32 out per row
    m_cap = max(1, rows_budget // tile_h)
    if total_tiles >= 2:
        m_cap = min(m_cap, total_tiles // 2)
    m = _largest_divisor_leq(total_tiles, m_cap)
    tile_rows2 = tile_h * m

    conv_flat = conv_p.reshape(n * hp, wd, coutp)
    cparams2 = pltpu.CompilerParams(
        dimension_semantics=("parallel",),
        vmem_limit_bytes=VMEM_LIMIT,
    )
    out_flat = pl.pallas_call(
        _bn_act_kernel,
        grid=(total_tiles // m,),
        in_specs=[
            pl.BlockSpec((tile_rows2, wd, coutp), lambda r: (r, 0, 0)),
            pl.BlockSpec((1, 1, coutp), lambda r: (0, 0, 0)),
            pl.BlockSpec((1, 1, coutp), lambda r: (0, 0, 0)),
        ],
        out_specs=pl.BlockSpec((tile_rows2, wd, coutp), lambda r: (r, 0, 0)),
        out_shape=jax.ShapeDtypeStruct((n * hp, wd, coutp), jnp.float32),
        compiler_params=cparams2,
    )(conv_flat, scale_p, shift_p)

    # Drop H/Cout padding, back to NCHW.
    # TODO(synk): when CNNBlocks are chained, keep NHWC + padded Cout between
    # blocks and only slice/transpose at network boundaries.
    out = out_flat.reshape(n, hp, wd, coutp)[:, :h, :, :cout]
    return jnp.transpose(out, (0, 3, 1, 2))


def reference(x_nchw, w_oihw, gamma, beta):
    """Pure-JAX f32 reference mirroring the PyTorch forward (training-mode BN)."""
    conv = lax.conv_general_dilated(
        x_nchw, w_oihw, window_strides=(1, 1),
        padding=[(PAD, PAD), (PAD, PAD)],
        dimension_numbers=("NCHW", "OIHW", "NCHW"))
    mean = jnp.mean(conv, axis=(0, 2, 3), keepdims=True)
    var = jnp.mean((conv - mean) ** 2, axis=(0, 2, 3), keepdims=True)
    xhat = (conv - mean) / jnp.sqrt(var + EPS)
    y = xhat * gamma.reshape(1, -1, 1, 1) + beta.reshape(1, -1, 1, 1)
    return jnp.where(y >= 0, y, y * NEG_SLOPE)


if __name__ == "__main__":
    key = jax.random.PRNGKey(0)
    k1, k2, k3, k4 = jax.random.split(key, 4)

    N, CIN, COUT, H, W = 2, 4, 8, 16, 16
    x = jax.random.normal(k1, (N, CIN, H, W), jnp.float32)
    w = 0.1 * jax.random.normal(k2, (COUT, CIN, KH, KW), jnp.float32)
    gamma = 1.0 + 0.1 * jax.random.normal(k3, (COUT,), jnp.float32)
    beta = 0.1 * jax.random.normal(k4, (COUT,), jnp.float32)

    out = cnn_block(x, w, gamma, beta)        # auto tile: grid (N=2, 1) then (2,)
    out = jax.block_until_ready(out)

    ref = reference(x, w, gamma, beta)
    assert out.shape == (N, COUT, H, W)
    # Tolerance reflects bf16 matmul operands + bf16 conv intermediate (f32
    # accumulation / f32 BN stats); set MATMUL_DTYPE = jnp.float32 for ~1e-6 match.
    assert jnp.allclose(out, ref, atol=5e-2, rtol=5e-2), "mismatch vs reference"
    print("KERNEL_OK")
</pallas_src>

<mosaic_0001>
module attributes {stable_mosaic.version = 11 : i64} {
  func.func @_bn_act_kernel(%arg0: i32, %arg1: memref<16x16x128xbf16, #tpu.memory_space<vmem>>, %arg2: memref<1x1x128xf32, #tpu.memory_space<vmem>>, %arg3: memref<1x1x128xf32, #tpu.memory_space<vmem>>, %arg4: memref<16x16x128xf32, #tpu.memory_space<vmem>>) attributes {dimension_semantics = [#tpu.dimension_semantics<parallel>], iteration_bounds = array<i64: 2>, scalar_prefetch = 0 : i64, scratch_operands = 0 : i64, tpu.core_type = #tpu.core_type<tc>, window_params = [{transform_indices = @transform_0, window_bounds = array<i64: 16, 16, 128>}, {pipeline_mode = #tpu.pipeline_mode<synchronous>, transform_indices = @transform_1, window_bounds = array<i64: 1, 1, 128>}, {pipeline_mode = #tpu.pipeline_mode<synchronous>, transform_indices = @transform_2, window_bounds = array<i64: 1, 1, 128>}, {transform_indices = @transform_3, window_bounds = array<i64: 16, 16, 128>}]} {
    %c0 = arith.constant 0 : index
    %c0_0 = arith.constant 0 : index
    %c0_1 = arith.constant 0 : index
    %0 = vector.load %arg1[%c0, %c0_0, %c0_1] : memref<16x16x128xbf16, #tpu.memory_space<vmem>>, vector<16x16x128xbf16>
    %1 = arith.extf %0 : vector<16x16x128xbf16> to vector<16x16x128xf32>
    %c0_2 = arith.constant 0 : index
    %c0_3 = arith.constant 0 : index
    %c0_4 = arith.constant 0 : index
    %2 = vector.load %arg2[%c0_2, %c0_3, %c0_4] : memref<1x1x128xf32, #tpu.memory_space<vmem>>, vector<1x1x128xf32>
    %3 = vector.broadcast %2 : vector<1x1x128xf32> to vector<16x16x128xf32>
    %4 = arith.mulf %1, %3 : vector<16x16x128xf32>
    %c0_5 = arith.constant 0 : index
    %c0_6 = arith.constant 0 : index
    %c0_7 = arith.constant 0 : index
    %5 = vector.load %arg3[%c0_5, %c0_6, %c0_7] : memref<1x1x128xf32, #tpu.memory_space<vmem>>, vector<1x1x128xf32>
    %6 = vector.broadcast %5 : vector<1x1x128xf32> to vector<16x16x128xf32>
    %7 = arith.addf %4, %6 : vector<16x16x128xf32>
    %cst = arith.constant 0.000000e+00 : f32
    %8 = vector.broadcast %cst : f32 to vector<16x16x128xf32>
    %9 = arith.cmpf oge, %7, %8 : vector<16x16x128xf32>
    %cst_8 = arith.constant 0.1015625 : f32
    %10 = vector.broadcast %cst_8 : f32 to vector<16x16x128xf32>
    %11 = arith.mulf %7, %10 : vector<16x16x128xf32>
    %12 = arith.select %9, %7, %11 : vector<16x16x128xi1>, vector<16x16x128xf32>
    %c0_9 = arith.constant 0 : index
    %c0_10 = arith.constant 0 : index
    %c0_11 = arith.constant 0 : index
    %13 = vector.load %arg4[%c0_9, %c0_10, %c0_11] : memref<16x16x128xf32, #tpu.memory_space<vmem>>, vector<16x16x128xf32>
    tpu.vector_store %arg4[%c0_9, %c0_10, %c0_11], %12 {strides = array<i32>} : memref<16x16x128xf32, #tpu.memory_space<vmem>>, vector<16x16x128xf32>,
    return
  }
  func.func @transform_0(%arg0: i32) -> (i32, i32, i32) {
    %c0_i32 = arith.constant 0 : i32
    %c0_i32_0 = arith.constant 0 : i32
    %c0_i32_1 = arith.constant 0 : i32
    return %arg0, %c0_i32, %c0_i32_0 : i32, i32, i32
  }
  func.func @transform_1(%arg0: i32) -> (i32, i32, i32) {
    %c0_i32 = arith.constant 0 : i32
    %c0_i32_0 = arith.constant 0 : i32
    %c0_i32_1 = arith.constant 0 : i32
    %c0_i32_2 = arith.constant 0 : i32
    return %c0_i32, %c0_i32_0, %c0_i32_1 : i32, i32, i32
  }
  func.func @transform_2(%arg0: i32) -> (i32, i32, i32) {
    %c0_i32 = arith.constant 0 : i32
    %c0_i32_0 = arith.constant 0 : i32
    %c0_i32_1 = arith.constant 0 : i32
    %c0_i32_2 = arith.constant 0 : i32
    return %c0_i32, %c0_i32_0, %c0_i32_1 : i32, i32, i32
  }
  func.func @transform_3(%arg0: i32) -> (i32, i32, i32) {
    %c0_i32 = arith.constant 0 : i32
    %c0_i32_0 = arith.constant 0 : i32
    %c0_i32_1 = arith.constant 0 : i32
    return %arg0, %c0_i32, %c0_i32_0 : i32, i32, i32
  }
}

module attributes {stable_mosaic.version = 11 : i64} {
  func.func @_conv_stats_kernel(%arg0: i32, %arg1: i32, %arg2: memref<1x16x18x4xbf16, #tpu.memory_space<vmem>>, %arg3: memref<1x1x2x18x4xbf16, #tpu.memory_space<vmem>>, %arg4: memref<36x128xbf16, #tpu.memory_space<vmem>>, %arg5: memref<1x16x16x128xbf16, #tpu.memory_space<vmem>>, %arg6: memref<1x1x2x128xf32, #tpu.memory_space<vmem>>) attributes {dimension_semantics = [#tpu.dimension_semantics<parallel>, #tpu.dimension_semantics<parallel>], iteration_bounds = array<i64: 2, 1>, scalar_prefetch = 0 : i64, scratch_operands = 0 : i64, tpu.core_type = #tpu.core_type<tc>, window_params = [{transform_indices = @transform_0, window_bounds = array<i64: 1, 16, 18, 4>}, {transform_indices = @transform_1, window_bounds = array<i64: 1, 1, 2, 18, 4>}, {pipeline_mode = #tpu.pipeline_mode<synchronous>, transform_indices = @transform_2, window_bounds = array<i64: 36, 128>}, {transform_indices = @transform_3, window_bounds = array<i64: 1, 16, 16, 128>}, {transform_indices = @transform_4, window_bounds = array<i64: 1, 1, 2, 128>}]} {
    %c0 = arith.constant 0 : index
    %c0_0 = arith.constant 0 : index
    %c0_1 = arith.constant 0 : index
    %c0_2 = arith.constant 0 : index
    %c0_3 = arith.constant 0 : index
    %0 = vector.load %arg3[%c0, %c0_0, %c0_1, %c0_2, %c0_3] : memref<1x1x2x18x4xbf16, #tpu.memory_space<vmem>>, vector<1x1x2x18x4xbf16>
    %1 = vector.shape_cast %0 : vector<1x1x2x18x4xbf16> to vector<2x18x4xbf16>
    %2 = vector.extract_strided_slice %1 {offsets = [0, 0, 0], sizes = [1, 18, 4], strides = [1, 1, 1]} : vector<2x18x4xbf16> to vector<1x18x4xbf16>
    %c0_4 = arith.constant 0 : index
    %c0_5 = arith.constant 0 : index
    %c0_6 = arith.constant 0 : index
    %c0_7 = arith.constant 0 : index
    %3 = vector.load %arg2[%c0_4, %c0_5, %c0_6, %c0_7] : memref<1x16x18x4xbf16, #tpu.memory_space<vmem>>, vector<1x16x18x4xbf16>
    %4 = vector.shape_cast %3 : vector<1x16x18x4xbf16> to vector<16x18x4xbf16>
    %5 = vector.extract_strided_slice %1 {offsets = [1, 0, 0], sizes = [1, 18, 4], strides = [1, 1, 1]} : vector<2x18x4xbf16> to vector<1x18x4xbf16>
    %6 = tpu.concatenate %2, %4, %5 in 0 : vector<1x18x4xbf16>, vector<16x18x4xbf16>, vector<1x18x4xbf16> -> vector<18x18x4xbf16>
    %7 = vector.extract_strided_slice %6 {offsets = [0, 0, 0], sizes = [16, 16, 4], strides = [1, 1, 1]} : vector<18x18x4xbf16> to vector<16x16x4xbf16>
    %8 = vector.extract_strided_slice %6 {offsets = [0, 1, 0], sizes = [16, 16, 4], strides = [1, 1, 1]} : vector<18x18x4xbf16> to vector<16x16x4xbf16>
    %9 = vector.extract_strided_slice %6 {offsets = [0, 2, 0], sizes = [16, 16, 4], strides = [1, 1, 1]} : vector<18x18x4xbf16> to vector<16x16x4xbf16>
    %10 = vector.extract_strided_slice %6 {offsets = [1, 0, 0], sizes = [16, 16, 4], strides = [1, 1, 1]} : vector<18x18x4xbf16> to vector<16x16x4xbf16>
    %11 = vector.extract_strided_slice %6 {offsets = [1, 1, 0], sizes = [16, 16, 4], strides = [1, 1, 1]} : vector<18x18x4xbf16> to vector<16x16x4xbf16>
    %12 = vector.extract_strided_slice %6 {offsets = [1, 2, 0], sizes = [16, 16, 4], strides = [1, 1, 1]} : vector<18x18x4xbf16> to vector<16x16x4xbf16>
    %13 = vector.extract_strided_slice %6 {offsets = [2, 0, 0], sizes = [16, 16, 4], strides = [1, 1, 1]} : vector<18x18x4xbf16> to vector<16x16x4xbf16>
    %14 = vector.extract_strided_slice %6 {offsets = [2, 1, 0], sizes = [16, 16, 4], strides = [1, 1, 1]} : vector<18x18x4xbf16> to vector<16x16x4xbf16>
    %15 = vector.extract_strided_slice %6 {offsets = [2, 2, 0], sizes = [16, 16, 4], strides = [1, 1, 1]} : vector<18x18x4xbf16> to vector<16x16x4xbf16>
    %16 = tpu.concatenate %7, %8, %9, %10, %11, %12, %13, %14, %15 in 2 : vector<16x16x4xbf16>, vector<16x16x4xbf16>, vector<16x16x4xbf16>, vector<16x16x4xbf16>, vector<16x16x4xbf16>, vector<16x16x4xbf16>, vector<16x16x4xbf16>, vector<16x16x4xbf16>, vector<16x16x4xbf16> -> vector<16x16x36xbf16>
    %17 = vector.shape_cast %16 : vector<16x16x36xbf16> to vector<256x36xbf16>
    %c0_8 = arith.constant 0 : index
    %c0_9 = arith.constant 0 : index
    %18 = vector.load %arg4[%c0_8, %c0_9] : memref<36x128xbf16, #tpu.memory_space<vmem>>, vector<36x128xbf16>
    %cst = arith.constant dense<0.000000e+00> : vector<256x128xf32>
    %19 = tpu.matmul %17, %18, %cst {dimension_numbers = #tpu.dot_dimension_numbers<[1], [0], [0], [1], [0, 0, 1, 1], [], []>} : vector<256x36xbf16>, vector<36x128xbf16>, vector<256x128xf32> -> vector<256x128xf32>
    %20 = vector.shape_cast %19 : vector<256x128xf32> to vector<1x16x16x128xf32>
    %21 = arith.truncf %20 : vector<1x16x16x128xf32> to vector<1x16x16x128xbf16>
    %c0_10 = arith.constant 0 : index
    %c0_11 = arith.constant 0 : index
    %c0_12 = arith.constant 0 : index
    %c0_13 = arith.constant 0 : index
    %22 = vector.load %arg5[%c0_10, %c0_11, %c0_12, %c0_13] : memref<1x16x16x128xbf16, #tpu.memory_space<vmem>>, vector<1x16x16x128xbf16>
    tpu.vector_store %arg5[%c0_10, %c0_11, %c0_12, %c0_13], %21 {strides = array<i32>} : memref<1x16x16x128xbf16, #tpu.memory_space<vmem>>, vector<1x16x16x128xbf16>,
    %cst_14 = arith.constant dense<0.000000e+00> : vector<128xf32>
    %23 = vector.multi_reduction <add>, %19, %cst_14 [0] : vector<256x128xf32> to vector<128xf32>
    %24 = vector.shape_cast %23 : vector<128xf32> to vector<1x128xf32>
    %25 = arith.mulf %19, %19 : vector<256x128xf32>
    %cst_15 = arith.constant dense<0.000000e+00> : vector<128xf32>
    %26 = vector.multi_reduction <add>, %25, %cst_15 [0] : vector<256x128xf32> to vector<128xf32>
    %27 = vector.shape_cast %26 : vector<128xf32> to vector<1x128xf32>
    %28 = tpu.concatenate %24, %27 in 0 : vector<1x128xf32>, vector<1x128xf32> -> vector<2x128xf32>
    %29 = vector.shape_cast %28 : vector<2x128xf32> to vector<1x1x2x128xf32>
    %c0_16 = arith.constant 0 : index
    %c0_17 = arith.constant 0 : index
    %c0_18 = arith.constant 0 : index
    %c0_19 = arith.constant 0 : index
    %30 = vector.load %arg6[%c0_16, %c0_17, %c0_18, %c0_19] : memref<1x1x2x128xf32, #tpu.memory_space<vmem>>, vector<1x1x2x128xf32>
    tpu.vector_store %arg6[%c0_16, %c0_17, %c0_18, %c0_19], %29 {strides = array<i32>} : memref<1x1x2x128xf32, #tpu.memory_space<vmem>>, vector<1x1x2x128xf32>,
    return
  }
  func.func @transform_0(%arg0: i32, %arg1: i32) -> (i32, i32, i32, i32) {
    %c0_i32 = arith.constant 0 : i32
    %c0_i32_0 = arith.constant 0 : i32
    %c0_i32_1 = arith.constant 0 : i32
    return %arg0, %arg1, %c0_i32, %c0_i32_0 : i32, i32, i32, i32
  }
  func.func @transform_1(%arg0: i32, %arg1: i32) -> (i32, i32, i32, i32, i32) {
    %c0_i32 = arith.constant 0 : i32
    %c0_i32_0 = arith.constant 0 : i32
    %c0_i32_1 = arith.constant 0 : i32
    %c0_i32_2 = arith.constant 0 : i32
    return %arg0, %arg1, %c0_i32, %c0_i32_0, %c0_i32_1 : i32, i32, i32, i32, i32
  }
  func.func @transform_2(%arg0: i32, %arg1: i32) -> (i32, i32) {
    %c0_i32 = arith.constant 0 : i32
    %c0_i32_0 = arith.constant 0 : i32
    %c0_i32_1 = arith.constant 0 : i32
    return %c0_i32, %c0_i32_0 : i32, i32
  }
  func.func @transform_3(%arg0: i32, %arg1: i32) -> (i32, i32, i32, i32) {
    %c0_i32 = arith.constant 0 : i32
    %c0_i32_0 = arith.constant 0 : i32
    %c0_i32_1 = arith.constant 0 : i32
    return %arg0, %arg1, %c0_i32, %c0_i32_0 : i32, i32, i32, i32
  }
  func.func @transform_4(%arg0: i32, %arg1: i32) -> (i32, i32, i32, i32) {
    %c0_i32 = arith.constant 0 : i32
    %c0_i32_0 = arith.constant 0 : i32
    %c0_i32_1 = arith.constant 0 : i32
    return %arg0, %arg1, %c0_i32, %c0_i32_0 : i32, i32, i32, i32
  }
}

</mosaic_0001>

<llo_original>
// kernel: cnn_block.3
$region0: #{cnn_block.3}
  #allocation0 [shape = 'u32[]', space=smem, size = 0x4, offset = 0x4, fixed_abs, tag = 'smem constant byte address 0x4 - core index']
  #allocation1 [shape = 'u32[144,128]{1,0:T(1,128)}', space=vmem, size = 0x12000, scoped, tag = 'internal scratch']
  %s0 = inlined_call_operand.hbm [shape: bf16[32,16,128], index: 0, kind: input, shape index: {}]
  %s1 = inlined_call_operand.hbm [shape: f32[1,1,128], index: 1, kind: input, shape index: {}]
  %s2 = inlined_call_operand.hbm [shape: f32[1,1,128], index: 2, kind: input, shape index: {}]
  %s3 = inlined_call_operand.hbm [shape: f32[32,16,128], index: 3, kind: output, shape index: {}]
  %s4 = sld [smem:[#allocation0]]
  $region57: #{cnn_block.3} parent=0
    _
  %s6 = ssub.s32 1, %s4
  %s7 = scalar_select 0, %s6, %s4
  $region1: #{cnn_block.3} parent=0
    #allocation2 [shape = 'u8[131072]{0}', space=vmem, size = 0x20000, scoped, tag = 'input window, operand 0']
    #allocation3 [shape = 's32[2]{0}', space=sflag, size = 0x8, scoped, tag = 'scoped memory for cnn_block.3']
    #allocation4 [shape = 's32[2]{0}', space=sflag, size = 0x8, scoped, tag = 'scoped memory for cnn_block.3']
    #allocation5 [shape = 'u8[512]{0}', space=vmem, size = 0x400, scoped, tag = 'input window, operand 1, single buffered']
    #allocation6 [shape = 's32[1]{0}', space=sflag, size = 0x4, scoped, tag = 'scoped memory for cnn_block.3']
    #allocation7 [shape = 'u8[512]{0}', space=vmem, size = 0x400, scoped, tag = 'input window, operand 2, single buffered']
    #allocation8 [shape = 'u8[262144]{0}', space=vmem, size = 0x40000, scoped, tag = 'output window, operand 0']
    %8 = vsyncpa [#allocation3], 0
    %s9 = scalar_lea.sflag [#allocation3], 1
    %10 = vsyncpa %s9, 0
    %11 = vsyncpa [#allocation6], 0
    %12 = vsyncpa [#allocation4], 0
    %s13 = scalar_lea.sflag [#allocation4], 1
    %14 = vsyncpa %s13, 0
    loop: start=0, step=1, limit=4
    $region2: #{cnn_block.3} parent=1 // loop_pre_header
      _
    $region3: #{cnn_block.3} parent=1 // loop_header
      %s16 = sphi 0, %s20
      %p17 = scmp.ge.s32.totalorder %s16, 4
      %s26 = sphi 0, %s28
      %s29 = sphi 0, %s26
      %s30 = sphi 0, %s29
      %s46 = sphi 0, %s30
      %s50 = sphi 0, %s50
      %s52 = sphi 0, %s50
      %s53 = sphi 0, %s52
      %s67 = sphi 0, %s53
      %s71 = sphi 0, %s71
      %s73 = sphi 0, %s71
      %s74 = sphi 0, %s73
      %s88 = sphi 0, %s74
      %s94 = sphi 0, %s96
      %s97 = sphi 0, %s94
      %s98 = sphi 0, %s97
      %s114 = sphi 0, %s98
    $region4: #{cnn_block.3} parent=1 // loop_header_branch
      %19 = sbr.rel (%p17) target = $region8
    $region5: #{cnn_block.3} parent=1 // loop_body
      %s21 = ssub.s32 %s16, 1
      %s22 = ssub.s32 %s16, 2
      %s23 = sadd.s32 %s16, 1
      %s24 = ssub.s32 %s16, %s23
      %p25 = scmp.eq.s32.totalorder %s24, 0
      %s27 = sadd.s32 %s26, 1
      %s28 = scalar_select %p25, %s26, %s27
      %p31 = pneg %p25
      %p32 = scmp.eq.s32.totalorder %s16, 1
      %p33 = por %p31, %p32
      %p34 = scmp.ne.s32.totalorder %s26, %s29
      %p35 = scmp.eq.s32.totalorder %s16, 0
      %p36 = por %p34, %p35
      %p37 = scmp.ne.s32.totalorder %s26, %s29
      %p38 = scmp.eq.s32.totalorder %s21, 1
      %p39 = por %p37, %p38
      %p40 = scmp.ne.s32.totalorder %s29, %s30
      %p41 = scmp.eq.s32.totalorder %s21, 0
      %p42 = por %p40, %p41
      %p43 = scmp.ne.s32.totalorder %s29, %s30
      %p44 = scmp.eq.s32.totalorder %s22, 1
      %p45 = por %p43, %p44
      %p47 = scmp.ne.s32.totalorder %s30, %s46
      %p48 = scmp.eq.s32.totalorder %s22, 0
      %p49 = por %p47, %p48
      %s51 = sadd.s32 %s50, 1
      %p54 = scmp.eq.s32.totalorder %s16, 1
      %p55 = scmp.ne.s32.totalorder %s50, %s52
      %p56 = scmp.eq.s32.totalorder %s16, 0
      %p57 = por %p55, %p56
      %p58 = scmp.ne.s32.totalorder %s50, %s52
      %p59 = scmp.eq.s32.totalorder %s21, 1
      %p60 = por %p58, %p59
      %p61 = scmp.ne.s32.totalorder %s52, %s53
      %p62 = scmp.eq.s32.totalorder %s21, 0
      %p63 = por %p61, %p62
      %p64 = scmp.ne.s32.totalorder %s52, %s53
      %p65 = scmp.eq.s32.totalorder %s22, 1
      %p66 = por %p64, %p65
      %p68 = scmp.ne.s32.totalorder %s53, %s67
      %p69 = scmp.eq.s32.totalorder %s22, 0
      %p70 = por %p68, %p69
      %s72 = sadd.s32 %s71, 1
      %p75 = scmp.eq.s32.totalorder %s16, 1
      %p76 = scmp.ne.s32.totalorder %s71, %s73
      %p77 = scmp.eq.s32.totalorder %s16, 0
      %p78 = por %p76, %p77
      %p79 = scmp.ne.s32.totalorder %s71, %s73
      %p80 = scmp.eq.s32.totalorder %s21, 1
      %p81 = por %p79, %p80
      %p82 = scmp.ne.s32.totalorder %s73, %s74
      %p83 = scmp.eq.s32.totalorder %s21, 0
      %p84 = por %p82, %p83
      %p85 = scmp.ne.s32.totalorder %s73, %s74
      %p86 = scmp.eq.s32.totalorder %s22, 1
      %p87 = por %p85, %p86
      %p89 = scmp.ne.s32.totalorder %s74, %s88
      %p90 = scmp.eq.s32.totalorder %s22, 0
      %p91 = por %p89, %p90
      %s92 = ssub.s32 %s16, %s23
      %p93 = scmp.eq.s32.totalorder %s92, 0
      %s95 = sadd.s32 %s94, 1
      %s96 = scalar_select %p93, %s94, %s95
      %p99 = pneg %p93
      %p100 = scmp.eq.s32.totalorder %s16, 1
      %p101 = por %p99, %p100
      %p102 = scmp.ne.s32.totalorder %s94, %s97
      %p103 = scmp.eq.s32.totalorder %s16, 0
      %p104 = por %p102, %p103
      %p105 = scmp.ne.s32.totalorder %s94, %s97
      %p106 = scmp.eq.s32.totalorder %s21, 1
      %p107 = por %p105, %p106
      %p108 = scmp.ne.s32.totalorder %s97, %s98
      %p109 = scmp.eq.s32.totalorder %s21, 0
      %p110 = por %p108, %p109
      %p111 = scmp.ne.s32.totalorder %s97, %s98
      %p112 = scmp.eq.s32.totalorder %s22, 1
      %p113 = por %p111, %p112
      %p115 = scmp.ne.s32.totalorder %s98, %s114
      %p116 = scmp.eq.s32.totalorder %s22, 0
      %p117 = por %p115, %p116
      %p118 = scmp.le.s32.totalorder 1, %s16
      %p119 = scmp.lt.s32.totalorder %s16, 3
      %p120 = pnand %p118, %p119
      %p121 = pneg %p120
      // Predicated region
      $region9: #{cnn_block.3} parent=5 // pred_check
        _
      $region10: #{cnn_block.3} parent=5 // pred_check_branch
        %123 = sbr.rel (%p120) target = $region12
      $region11: #{cnn_block.3} parent=5 // pred_region
        %s124 = ssub.s32 %s16, 1
        // Predicated region
        $region13: #{cnn_block.3} parent=11 // pred_check
          %p125 = pneg %p63
        $region14: #{cnn_block.3} parent=11 // pred_check_branch
          %127 = sbr.rel (%p125) target = $region16
        $region15: #{cnn_block.3} parent=11 // pred_region
          %s129 = ssub.s32 16, 16
          %130 = vsyncadd [#allocation6], %s129
          %s132 = sshll.u32 [#allocation5], 4
          %s133 = int_to_ptr.vmem [resolvable:$true] %s132
          %135 = dma.hbm_to_vmem [thread:$0]  %s1, 16, %s133, [#allocation6]
        $region16: #{cnn_block.3} parent=11 // pred_fallthru
          _
        // Predicated region
        $region17: #{cnn_block.3} parent=11 // pred_check
          %p136 = pneg %p84
        $region18: #{cnn_block.3} parent=11 // pred_check_branch
          %138 = sbr.rel (%p136) target = $region20
        $region19: #{cnn_block.3} parent=11 // pred_region
          %s140 = ssub.s32 16, 16
          %141 = vsyncadd [#allocation6], %s140
          %s143 = sshll.u32 [#allocation7], 4
          %s144 = int_to_ptr.vmem [resolvable:$true] %s143
          %146 = dma.hbm_to_vmem [thread:$0]  %s2, 16, %s144, [#allocation6]
        $region20: #{cnn_block.3} parent=11 // pred_fallthru
          _
      $region12: #{cnn_block.3} parent=5 // pred_fallthru
        _
      %p147 = scmp.lt.s32.totalorder %s16, 2
      // Predicated region
      $region21: #{cnn_block.3} parent=5 // pred_check
        %p148 = pneg %p147
      $region22: #{cnn_block.3} parent=5 // pred_check_branch
        %150 = sbr.rel (%p148) target = $region24
      $region23: #{cnn_block.3} parent=5 // pred_region
        // Predicated region
        $region25: #{cnn_block.3} parent=23 // pred_check
          %p151 = pneg %p36
        $region26: #{cnn_block.3} parent=23 // pred_check_branch
          %153 = sbr.rel (%p151) target = $region28
        $region27: #{cnn_block.3} parent=23 // pred_region
          %s154 = sand.u32 %s26, 1
          %s155 = scalar_lea.sflag [#allocation3], %s154
          %s156 = sand.u32 %s26, 1
          %s157 = smul.addr %s156, 128
          %s158 = scalar_lea.vmem [#allocation2], %s157
          %s159 = smul.u32 16, %s16
          %s161 = ssub.s32 2048, 2048
          %162 = vsyncadd %s155, %s161
          %s163 = smul.addr %s159, 2
          %s164 = smul.addr %s163, 64
          %s165 = scalar_lea.hbm %s0, %s164
          %s166 = sshll.u32 %s158, 4
          %s167 = int_to_ptr.vmem [resolvable:$true] %s166
          %172 = dma.hbm_to_vmem [thread:$0]  %s165, 2048, %s167, %s155, 64, 64, 4
        $region28: #{cnn_block.3} parent=23 // pred_fallthru
          _
      $region24: #{cnn_block.3} parent=5 // pred_fallthru
        _
      %p173 = scmp.le.s32.totalorder 1, %s16
      %p174 = scmp.lt.s32.totalorder %s16, 3
      %p175 = pnand %p173, %p174
      %p176 = pneg %p175
      // Predicated region
      $region29: #{cnn_block.3} parent=5 // pred_check
        _
      $region30: #{cnn_block.3} parent=5 // pred_check_branch
        %178 = sbr.rel (%p175) target = $region32
      $region31: #{cnn_block.3} parent=5 // pred_region
        %s179 = ssub.s32 %s16, 1
        %s180 = sand.u32 %s29, 1
        %s181 = scalar_lea.sflag [#allocation3], %s180
        %s182 = sand.u32 %s29, 1
        %s183 = smul.addr %s182, 128
        %s184 = scalar_lea.vmem [#allocation2], %s183
        // Predicated region
        $region33: #{cnn_block.3} parent=31 // pred_check
          %p185 = pneg %p42
        $region34: #{cnn_block.3} parent=31 // pred_check_branch
          %187 = sbr.rel (%p185) target = $region36
        $region35: #{cnn_block.3} parent=31 // pred_region
          %188 = dma.done %s181, 2048
        $region36: #{cnn_block.3} parent=31 // pred_fallthru
          _
        // Predicated region
        $region37: #{cnn_block.3} parent=31 // pred_check
          %p189 = pneg %p63
        $region38: #{cnn_block.3} parent=31 // pred_check_branch
          %191 = sbr.rel (%p189) target = $region40
        $region39: #{cnn_block.3} parent=31 // pred_region
          %192 = dma.done [#allocation6], 16
        $region40: #{cnn_block.3} parent=31 // pred_fallthru
          _
        // Predicated region
        $region41: #{cnn_block.3} parent=31 // pred_check
          %p193 = pneg %p84
        $region42: #{cnn_block.3} parent=31 // pred_check_branch
          %195 = sbr.rel (%p193) target = $region44
        $region43: #{cnn_block.3} parent=31 // pred_region
          %196 = dma.done [#allocation6], 16
        $region44: #{cnn_block.3} parent=31 // pred_fallthru
          _
        %s197 = sand.u32 %s29, 1
        %s198 = scalar_lea.sflag [#allocation3], %s197
        %s199 = sand.u32 %s29, 1
        %s200 = smul.addr %s199, 128
        %s201 = scalar_lea.vmem [#allocation2], %s200
        %p202 = pneg %p42
        %p203 = pneg %p39
        %p204 = pneg %p63
        %p205 = pneg %p60
        %p206 = pneg %p84
        %p207 = pneg %p81
        %p208 = pneg %p110
        %p209 = pneg %p107
        %s210 = sand.u32 %s97, 1
        %s211 = scalar_lea.sflag [#allocation4], %s210
        %s212 = sand.u32 %s97, 1
        %s213 = smul.addr %s212, 256
        %s214 = scalar_lea.vmem [#allocation8], %s213
        %s215 = smul.u32 16, %s21
        %s216 = smul.u32 16, %s21
        %v217 = vld [vmem:[%s184] sm:$0xf]
        %v218 = vld [vmem:[%s184 + $0x4] sm:$0xf]
        %v219 = vld [vmem:[%s184 + $0x8] sm:$0xf]
        %v220 = vld [vmem:[%s184 + $0xc] sm:$0xf]
        %v221 = vld [vmem:[%s184 + $0x10] sm:$0xf]
        %v222 = vld [vmem:[%s184 + $0x14] sm:$0xf]
        %v223 = vld [vmem:[%s184 + $0x18] sm:$0xf]
        %v224 = vld [vmem:[%s184 + $0x1c] sm:$0xf]
        %v225 = vld [vmem:[%s184 + $0x20] sm:$0xf]
        %v226 = vld [vmem:[%s184 + $0x24] sm:$0xf]
        %v227 = vld [vmem:[%s184 + $0x28] sm:$0xf]
        %v228 = vld [vmem:[%s184 + $0x2c] sm:$0xf]
        %v229 = vld [vmem:[%s184 + $0x30] sm:$0xf]
        %v230 = vld [vmem:[%s184 + $0x34] sm:$0xf]
        %v231 = vld [vmem:[%s184 + $0x38] sm:$0xf]
        %v232 = vld [vmem:[%s184 + $0x3c] sm:$0xf]
        %v233 = vld [vmem:[%s184 + $0x40] sm:$0xf]
        %v234 = vld [vmem:[%s184 + $0x44] sm:$0xf]
        %v235 = vld [vmem:[%s184 + $0x48] sm:$0xf]
        %v236 = vld [vmem:[%s184 + $0x4c] sm:$0xf]
        %v237 = vld [vmem:[%s184 + $0x50] sm:$0xf]
        %v238 = vld [vmem:[%s184 + $0x54] sm:$0xf]
        %v239 = vld [vmem:[%s184 + $0x58] sm:$0xf]
        %v240 = vld [vmem:[%s184 + $0x5c] sm:$0xf]
        %v241 = vld [vmem:[%s184 + $0x60] sm:$0xf]
        %v242 = vld [vmem:[%s184 + $0x64] sm:$0xf]
        %v243 = vld [vmem:[%s184 + $0x68] sm:$0xf]
        %v244 = vld [vmem:[%s184 + $0x6c] sm:$0xf]
        %v245 = vld [vmem:[%s184 + $0x70] sm:$0xf]
        %v246 = vld [vmem:[%s184 + $0x74] sm:$0xf]
        %v247 = vld [vmem:[%s184 + $0x78] sm:$0xf]
        %v248 = vld [vmem:[%s184 + $0x7c] sm:$0xf]
        %v249 = vunpack.c.l.bf16 %v217
        %v250 = vunpack.c.l.bf16 %v218
        %v251 = vunpack.c.l.bf16 %v219
        %v252 = vunpack.c.l.bf16 %v220
        %v253 = vunpack.c.l.bf16 %v221
        %v254 = vunpack.c.l.bf16 %v222
        %v255 = vunpack.c.l.bf16 %v223
        %v256 = vunpack.c.l.bf16 %v224
        %v257 = vunpack.c.l.bf16 %v225
        %v258 = vunpack.c.l.bf16 %v226
        %v259 = vunpack.c.l.bf16 %v227
        %v260 = vunpack.c.l.bf16 %v228
        %v261 = vunpack.c.l.bf16 %v229
        %v262 = vunpack.c.l.bf16 %v230
        %v263 = vunpack.c.l.bf16 %v231
        %v264 = vunpack.c.l.bf16 %v232
        %v265 = vunpack.c.l.bf16 %v233
        %v266 = vunpack.c.l.bf16 %v234
        %v267 = vunpack.c.l.bf16 %v235
        %v268 = vunpack.c.l.bf16 %v236
        %v269 = vunpack.c.l.bf16 %v237
        %v270 = vunpack.c.l.bf16 %v238
        %v271 = vunpack.c.l.bf16 %v239
        %v272 = vunpack.c.l.bf16 %v240
        %v273 = vunpack.c.l.bf16 %v241
        %v274 = vunpack.c.l.bf16 %v242
        %v275 = vunpack.c.l.bf16 %v243
        %v276 = vunpack.c.l.bf16 %v244
        %v277 = vunpack.c.l.bf16 %v245
        %v278 = vunpack.c.l.bf16 %v246
        %v279 = vunpack.c.l.bf16 %v247
        %v280 = vunpack.c.l.bf16 %v248
        %v281 = vld [vmem:[#allocation5] sm:$0x1]
        %v283 = vlaneseq
        %v284 = vshrl.u32 %v283, 7
        %v285 = vsub.s32 0, %v284
        %v286 = vrot.slane %v281, %v285
        %v288 = vmul.f32 %v249, %v286
        %v289 = vmul.f32 %v250, %v286
        %v290 = vmul.f32 %v251, %v286
        %v291 = vmul.f32 %v252, %v286
        %v292 = vmul.f32 %v253, %v286
        %v293 = vmul.f32 %v254, %v286
        %v294 = vmul.f32 %v255, %v286
        %v295 = vmul.f32 %v256, %v286
        %v296 = vmul.f32 %v257, %v286
        %v297 = vmul.f32 %v258, %v286
        %v298 = vmul.f32 %v259, %v286
        %v299 = vmul.f32 %v260, %v286
        %v300 = vmul.f32 %v261, %v286
        %v301 = vmul.f32 %v262, %v286
        %v302 = vmul.f32 %v263, %v286
        %v303 = vmul.f32 %v264, %v286
        %v304 = vmul.f32 %v265, %v286
        %v305 = vmul.f32 %v266, %v286
        %v306 = vmul.f32 %v267, %v286
        %v307 = vmul.f32 %v268, %v286
        %v308 = vmul.f32 %v269, %v286
        %v309 = vmul.f32 %v270, %v286
        %v310 = vmul.f32 %v271, %v286
        %v311 = vmul.f32 %v272, %v286
        %v312 = vmul.f32 %v273, %v286
        %v313 = vmul.f32 %v274, %v286
        %v314 = vmul.f32 %v275, %v286
        %v315 = vmul.f32 %v276, %v286
        %v316 = vmul.f32 %v277, %v286
        %v317 = vmul.f32 %v278, %v286
        %v318 = vmul.f32 %v279, %v286
        %v319 = vmul.f32 %v280, %v286
        %v320 = vld [vmem:[#allocation7] sm:$0x1]
        %v322 = vlaneseq
        %v323 = vshrl.u32 %v322, 7
        %v324 = vsub.s32 0, %v323
        %v325 = vrot.slane %v320, %v324
        %v327 = vadd.f32 %v288, %v325
        %v328 = vadd.f32 %v289, %v325
        %v329 = vadd.f32 %v290, %v325
        %v330 = vadd.f32 %v291, %v325
        %v331 = vadd.f32 %v292, %v325
        %v332 = vadd.f32 %v293, %v325
        %v333 = vadd.f32 %v294, %v325
        %v334 = vadd.f32 %v295, %v325
        %v335 = vadd.f32 %v296, %v325
        %v336 = vadd.f32 %v297, %v325
        %v337 = vadd.f32 %v298, %v325
        %v338 = vadd.f32 %v299, %v325
        %v339 = vadd.f32 %v300, %v325
        %v340 = vadd.f32 %v301, %v325
        %v341 = vadd.f32 %v302, %v325
        %v342 = vadd.f32 %v303, %v325
        %v343 = vadd.f32 %v304, %v325
        %v344 = vadd.f32 %v305, %v325
        %v345 = vadd.f32 %v306, %v325
        %v346 = vadd.f32 %v307, %v325
        %v347 = vadd.f32 %v308, %v325
        %v348 = vadd.f32 %v309, %v325
        %v349 = vadd.f32 %v310, %v325
        %v350 = vadd.f32 %v311, %v325
        %v351 = vadd.f32 %v312, %v325
        %v352 = vadd.f32 %v313, %v325
        %v353 = vadd.f32 %v314, %v325
        %v354 = vadd.f32 %v315, %v325
        %v355 = vadd.f32 %v316, %v325
        %v356 = vadd.f32 %v317, %v325
        %v357 = vadd.f32 %v318, %v325
        %v358 = vadd.f32 %v319, %v325
        %vm359 = vcmp.ge.f32.partialorder %v327, 0.0
        %vm360 = vcmp.ge.f32.partialorder %v328, 0.0
        %vm361 = vcmp.ge.f32.partialorder %v329, 0.0
        %vm362 = vcmp.ge.f32.partialorder %v330, 0.0
        %vm363 = vcmp.ge.f32.partialorder %v331, 0.0
        %vm364 = vcmp.ge.f32.partialorder %v332, 0.0
        %vm365 = vcmp.ge.f32.partialorder %v333, 0.0
        %vm366 = vcmp.ge.f32.partialorder %v334, 0.0
        %vm367 = vcmp.ge.f32.partialorder %v335, 0.0
        %vm368 = vcmp.ge.f32.partialorder %v336, 0.0
        %vm369 = vcmp.ge.f32.partialorder %v337, 0.0
        %vm370 = vcmp.ge.f32.partialorder %v338, 0.0
        %vm371 = vcmp.ge.f32.partialorder %v339, 0.0
        %vm372 = vcmp.ge.f32.partialorder %v340, 0.0
        %vm373 = vcmp.ge.f32.partialorder %v341, 0.0
        %vm374 = vcmp.ge.f32.partialorder %v342, 0.0
        %vm375 = vcmp.ge.f32.partialorder %v343, 0.0
        %vm376 = vcmp.ge.f32.partialorder %v344, 0.0
        %vm377 = vcmp.ge.f32.partialorder %v345, 0.0
        %vm378 = vcmp.ge.f32.partialorder %v346, 0.0
        %vm379 = vcmp.ge.f32.partialorder %v347, 0.0
        %vm380 = vcmp.ge.f32.partialorder %v348, 0.0
        %vm381 = vcmp.ge.f32.partialorder %v349, 0.0
        %vm382 = vcmp.ge.f32.partialorder %v350, 0.0
        %vm383 = vcmp.ge.f32.partialorder %v351, 0.0
        %vm384 = vcmp.ge.f32.partialorder %v352, 0.0
        %vm385 = vcmp.ge.f32.partialorder %v353, 0.0
        %vm386 = vcmp.ge.f32.partialorder %v354, 0.0
        %vm387 = vcmp.ge.f32.partialorder %v355, 0.0
        %vm388 = vcmp.ge.f32.partialorder %v356, 0.0
        %vm389 = vcmp.ge.f32.partialorder %v357, 0.0
        %vm390 = vcmp.ge.f32.partialorder %v358, 0.0
        %v391 = vmul.f32 %v327, 0.1015625
        %v392 = vmul.f32 %v328, 0.1015625
        %v393 = vmul.f32 %v329, 0.1015625
        %v394 = vmul.f32 %v330, 0.1015625
        %v395 = vmul.f32 %v331, 0.1015625
        %v396 = vmul.f32 %v332, 0.1015625
        %v397 = vmul.f32 %v333, 0.1015625
        %v398 = vmul.f32 %v334, 0.1015625
        %v399 = vmul.f32 %v335, 0.1015625
        %v400 = vmul.f32 %v336, 0.1015625
        %v401 = vmul.f32 %v337, 0.1015625
        %v402 = vmul.f32 %v338, 0.1015625
        %v403 = vmul.f32 %v339, 0.1015625
        %v404 = vmul.f32 %v340, 0.1015625
        %v405 = vmul.f32 %v341, 0.1015625
        %v406 = vmul.f32 %v342, 0.1015625
        %v407 = vmul.f32 %v343, 0.1015625
        %v408 = vmul.f32 %v344, 0.1015625
        %v409 = vmul.f32 %v345, 0.1015625
        %v410 = vmul.f32 %v346, 0.1015625
        %v411 = vmul.f32 %v347, 0.1015625
        %v412 = vmul.f32 %v348, 0.1015625
        %v413 = vmul.f32 %v349, 0.1015625
        %v414 = vmul.f32 %v350, 0.1015625
        %v415 = vmul.f32 %v351, 0.1015625
        %v416 = vmul.f32 %v352, 0.1015625
        %v417 = vmul.f32 %v353, 0.1015625
        %v418 = vmul.f32 %v354, 0.1015625
        %v419 = vmul.f32 %v355, 0.1015625
        %v420 = vmul.f32 %v356, 0.1015625
        %v421 = vmul.f32 %v357, 0.1015625
        %v422 = vmul.f32 %v358, 0.1015625
        %v423 = vsel %vm359, %v327, %v391
        %v424 = vsel %vm360, %v328, %v392
        %v425 = vsel %vm361, %v329, %v393
        %v426 = vsel %vm362, %v330, %v394
        %v427 = vsel %vm363, %v331, %v395
        %v428 = vsel %vm364, %v332, %v396
        %v429 = vsel %vm365, %v333, %v397
        %v430 = vsel %vm366, %v334, %v398
        %v431 = vsel %vm367, %v335, %v399
        %v432 = vsel %vm368, %v336, %v400
        %v433 = vsel %vm369, %v337, %v401
        %v434 = vsel %vm370, %v338, %v402
        %v435 = vsel %vm371, %v339, %v403
        %v436 = vsel %vm372, %v340, %v404
        %v437 = vsel %vm373, %v341, %v405
        %v438 = vsel %vm374, %v342, %v406
        %v439 = vsel %vm375, %v343, %v407
        %v440 = vsel %vm376, %v344, %v408
        %v441 = vsel %vm377, %v345, %v409
        %v442 = vsel %vm378, %v346, %v410
        %v443 = vsel %vm379, %v347, %v411
        %v444 = vsel %vm380, %v348, %v412
        %v445 = vsel %vm381, %v349, %v413
        %v446 = vsel %vm382, %v350, %v414
        %v447 = vsel %vm383, %v351, %v415
        %v448 = vsel %vm384, %v352, %v416
        %v449 = vsel %vm385, %v353, %v417
        %v450 = vsel %vm386, %v354, %v418
        %v451 = vsel %vm387, %v355, %v419
        %v452 = vsel %vm388, %v356, %v420
        %v453 = vsel %vm389, %v357, %v421
        %v454 = vsel %vm390, %v358, %v422
        %455 = vst [vmem:[%s214] sm:$0xff] %v423
        %456 = vst [vmem:[%s214 + $0x8] sm:$0xff] %v424
        %457 = vst [vmem:[%s214 + $0x10] sm:$0xff] %v425
        %458 = vst [vmem:[%s214 + $0x18] sm:$0xff] %v426
        %459 = vst [vmem:[%s214 + $0x20] sm:$0xff] %v427
        %460 = vst [vmem:[%s214 + $0x28] sm:$0xff] %v428
        %461 = vst [vmem:[%s214 + $0x30] sm:$0xff] %v429
        %462 = vst [vmem:[%s214 + $0x38] sm:$0xff] %v430
        %463 = vst [vmem:[%s214 + $0x40] sm:$0xff] %v431
        %464 = vst [vmem:[%s214 + $0x48] sm:$0xff] %v432
        %465 = vst [vmem:[%s214 + $0x50] sm:$0xff] %v433
        %466 = vst [vmem:[%s214 + $0x58] sm:$0xff] %v434
        %467 = vst [vmem:[%s214 + $0x60] sm:$0xff] %v435
        %468 = vst [vmem:[%s214 + $0x68] sm:$0xff] %v436
        %469 = vst [vmem:[%s214 + $0x70] sm:$0xff] %v437
        %470 = vst [vmem:[%s214 + $0x78] sm:$0xff] %v438
        %471 = vst [vmem:[%s214 + $0x80] sm:$0xff] %v439
        %472 = vst [vmem:[%s214 + $0x88] sm:$0xff] %v440
        %473 = vst [vmem:[%s214 + $0x90] sm:$0xff] %v441
        %474 = vst [vmem:[%s214 + $0x98] sm:$0xff] %v442
        %475 = vst [vmem:[%s214 + $0xa0] sm:$0xff] %v443
        %476 = vst [vmem:[%s214 + $0xa8] sm:$0xff] %v444
        %477 = vst [vmem:[%s214 + $0xb0] sm:$0xff] %v445
        %478 = vst [vmem:[%s214 + $0xb8] sm:$0xff] %v446
        %479 = vst [vmem:[%s214 + $0xc0] sm:$0xff] %v447
        %480 = vst [vmem:[%s214 + $0xc8] sm:$0xff] %v448
        %481 = vst [vmem:[%s214 + $0xd0] sm:$0xff] %v449
        %482 = vst [vmem:[%s214 + $0xd8] sm:$0xff] %v450
        %483 = vst [vmem:[%s214 + $0xe0] sm:$0xff] %v451
        %484 = vst [vmem:[%s214 + $0xe8] sm:$0xff] %v452
        %485 = vst [vmem:[%s214 + $0xf0] sm:$0xff] %v453
        %486 = vst [vmem:[%s214 + $0xf8] sm:$0xff] %v454
        %s487 = sand.u32 %s97, 1
        %s488 = scalar_lea.sflag [#allocation4], %s487
        %s489 = sand.u32 %s97, 1
        %s490 = smul.addr %s489, 256
        %s491 = scalar_lea.vmem [#allocation8], %s490
        // Predicated region
        $region45: #{cnn_block.3} parent=31 // pred_check
          %p492 = pneg %p107
        $region46: #{cnn_block.3} parent=31 // pred_check_branch
          %494 = sbr.rel (%p492) target = $region48
        $region47: #{cnn_block.3} parent=31 // pred_region
          %s495 = smul.u32 16, %s21
          %s497 = ssub.s32 4096, 4096
          %498 = vsyncadd %s488, %s497
          %s499 = smul.addr %s495, 2
          %s500 = smul.addr %s499, 128
          %s501 = scalar_lea.hbm %s3, %s500
          %s502 = sshll.u32 %s491, 4
          %s503 = int_to_ptr.vmem [resolvable:$true] %s502
          %508 = dma.vmem_to_hbm [thread:$0]  %s503, 4096, %s501, %s488, 128, 128, 8
        $region48: #{cnn_block.3} parent=31 // pred_fallthru
          _
      $region32: #{cnn_block.3} parent=5 // pred_fallthru
        _
      %p509 = scmp.le.s32.totalorder 2, %s16
      // Predicated region
      $region49: #{cnn_block.3} parent=5 // pred_check
        %p510 = pneg %p509
      $region50: #{cnn_block.3} parent=5 // pred_check_branch
        %512 = sbr.rel (%p510) target = $region52
      $region51: #{cnn_block.3} parent=5 // pred_region
        %s513 = ssub.s32 %s16, 2
        // Predicated region
        $region53: #{cnn_block.3} parent=51 // pred_check
          %p514 = pneg %p113
        $region54: #{cnn_block.3} parent=51 // pred_check_branch
          %516 = sbr.rel (%p514) target = $region56
        $region55: #{cnn_block.3} parent=51 // pred_region
          %s517 = sand.u32 %s98, 1
          %s518 = scalar_lea.sflag [#allocation4], %s517
          %s519 = sand.u32 %s98, 1
          %s520 = smul.addr %s519, 256
          %s521 = scalar_lea.vmem [#allocation8], %s520
          %522 = dma.done %s518, 4096
        $region56: #{cnn_block.3} parent=51 // pred_fallthru
          _
      $region52: #{cnn_block.3} parent=5 // pred_fallthru
        _
    $region6: #{cnn_block.3} parent=1 // loop_footer
      %s20 = sadd.s32 1, %s16
    $region7: #{cnn_block.3} parent=1 // loop_footer_branch
      %15 = sbr.rel target = $region3
    $region8: #{cnn_block.3} parent=1 // loop_exit
      _
    %523 = vsyncpa [#allocation3], 1
    %s524 = scalar_lea.sflag [#allocation3], 1
    %525 = vsyncpa %s524, 1
    %526 = vsyncpa [#allocation6], 1
    %527 = vsyncpa [#allocation4], 1
    %s528 = scalar_lea.sflag [#allocation4], 1
    %529 = vsyncpa %s528, 1

// kernel: cnn_block.2
$region0: #{cnn_block.2}
  #allocation0 [shape = 'u32[]', space=smem, size = 0x4, offset = 0x4, fixed_abs, tag = 'smem constant byte address 0x4 - core index']
  #allocation1 [shape = 'u32[144,128]{1,0:T(1,128)}', space=vmem, size = 0x12000, scoped, tag = 'internal scratch']
  %s0 = inlined_call_operand.hbm [shape: bf16[2,16,18,4], index: 0, kind: input, shape index: {}]
  %s1 = inlined_call_operand.hbm [shape: bf16[2,1,2,18,4], index: 1, kind: input, shape index: {}]
  %s2 = inlined_call_operand.hbm [shape: bf16[36,128], index: 2, kind: input, shape index: {}]
  %s3 = inlined_call_operand.hbm [shape: bf16[2,16,16,128], index: 3, kind: output, shape index: {0}]
  %s4 = inlined_call_operand.hbm [shape: f32[2,1,2,128], index: 4, kind: output, shape index: {1}]
  %5 = xla_tuple %s3, %s4
  %s6 = sld [smem:[#allocation0]]
  $region65: #{cnn_block.2} parent=0
    _
  %s8 = ssub.s32 1, %s6
  %s9 = scalar_select 0, %s8, %s6
  $region1: #{cnn_block.2} parent=0
    #allocation2 [shape = 'u8[196608]{0}', space=vmem, size = 0x30000, scoped, tag = 'input window, operand 0']
    #allocation3 [shape = 's32[2]{0}', space=sflag, size = 0x8, scoped, tag = 'scoped memory for cnn_block.2']
    #allocation4 [shape = 's32[2]{0}', space=sflag, size = 0x8, scoped, tag = 'scoped memory for cnn_block.2']
    #allocation5 [shape = 'u8[24576]{0}', space=vmem, size = 0x6000, scoped, tag = 'input window, operand 1']
    #allocation6 [shape = 's32[2]{0}', space=sflag, size = 0x8, scoped, tag = 'scoped memory for cnn_block.2']
    #allocation7 [shape = 'u8[10240]{0}', space=vmem, size = 0x2800, scoped, tag = 'input window, operand 2, single buffered']
    #allocation8 [shape = 'u8[131072]{0}', space=vmem, size = 0x20000, scoped, tag = 'output window, operand 0']
    #allocation9 [shape = 'u8[2048]{0}', space=vmem, size = 0x800, scoped, tag = 'output window, operand 1']
    #allocation10 [shape = 's32[2]{0}', space=sflag, size = 0x8, scoped, tag = 'scoped memory for cnn_block.2']
    %10 = vsyncpa [#allocation3], 0
    %s11 = scalar_lea.sflag [#allocation3], 1
    %12 = vsyncpa %s11, 0
    %13 = vsyncpa [#allocation6], 0
    %s14 = scalar_lea.sflag [#allocation6], 1
    %15 = vsyncpa %s14, 0
    %16 = vsyncpa [#allocation4], 0
    %s17 = scalar_lea.sflag [#allocation4], 1
    %18 = vsyncpa %s17, 0
    %19 = vsyncpa [#allocation10], 0
    %s20 = scalar_lea.sflag [#allocation10], 1
    %21 = vsyncpa %s20, 0
    loop: start=0, step=1, limit=4
    $region2: #{cnn_block.2} parent=1 // loop_pre_header
      _
    $region3: #{cnn_block.2} parent=1 // loop_header
      %s23 = sphi 0, %s27
      %p24 = scmp.ge.s32.totalorder %s23, 4
      %s30 = sphi 0, %s42
      %s31 = sphi 0, %s38
      %s32 = sphi 0, %s30
      %s33 = sphi 0, %s31
      %s34 = sphi 0, %s32
      %s35 = sphi 0, %s33
      %s47 = sphi 0, %s49
      %s50 = sphi 0, %s47
      %s51 = sphi 0, %s50
      %s67 = sphi 0, %s51
      %s75 = sphi 0, %s77
      %s78 = sphi 0, %s75
      %s79 = sphi 0, %s78
      %s95 = sphi 0, %s79
      %s99 = sphi 0, %s99
      %s101 = sphi 0, %s99
      %s102 = sphi 0, %s101
      %s116 = sphi 0, %s102
      %s124 = sphi 0, %s126
      %s127 = sphi 0, %s124
      %s128 = sphi 0, %s127
      %s144 = sphi 0, %s128
      %s152 = sphi 0, %s154
      %s155 = sphi 0, %s152
      %s156 = sphi 0, %s155
      %s172 = sphi 0, %s156
    $region4: #{cnn_block.2} parent=1 // loop_header_branch
      %26 = sbr.rel (%p24) target = $region8
    $region5: #{cnn_block.2} parent=1 // loop_body
      %s28 = ssub.s32 %s23, 1
      %s29 = ssub.s32 %s23, 2
      %s36 = sadd.s32 1, %s31
      %p37 = scmp.ge.s32.totalorder %s36, 1
      %s38 = scalar_select %p37, 0, %s36
      %s39 = sadd.s32 1, %s30
      %s40 = scalar_select %p37, %s39, %s30
      %p41 = scmp.ge.s32.totalorder %s40, 2
      %s42 = scalar_select %p41, 0, %s40
      %s43 = ssub.s32 %s30, %s42
      %s44 = ssub.s32 %s31, %s38
      %s45 = sor.u32 %s43, %s44
      %p46 = scmp.eq.s32.totalorder %s45, 0
      %s48 = sadd.s32 %s47, 1
      %s49 = scalar_select %p46, %s47, %s48
      %p52 = pneg %p46
      %p53 = scmp.eq.s32.totalorder %s23, 1
      %p54 = por %p52, %p53
      %p55 = scmp.ne.s32.totalorder %s47, %s50
      %p56 = scmp.eq.s32.totalorder %s23, 0
      %p57 = por %p55, %p56
      %p58 = scmp.ne.s32.totalorder %s47, %s50
      %p59 = scmp.eq.s32.totalorder %s28, 1
      %p60 = por %p58, %p59
      %p61 = scmp.ne.s32.totalorder %s50, %s51
      %p62 = scmp.eq.s32.totalorder %s28, 0
      %p63 = por %p61, %p62
      %p64 = scmp.ne.s32.totalorder %s50, %s51
      %p65 = scmp.eq.s32.totalorder %s29, 1
      %p66 = por %p64, %p65
      %p68 = scmp.ne.s32.totalorder %s51, %s67
      %p69 = scmp.eq.s32.totalorder %s29, 0
      %p70 = por %p68, %p69
      %s71 = ssub.s32 %s30, %s42
      %s72 = ssub.s32 %s31, %s38
      %s73 = sor.u32 %s71, %s72
      %p74 = scmp.eq.s32.totalorder %s73, 0
      %s76 = sadd.s32 %s75, 1
      %s77 = scalar_select %p74, %s75, %s76
      %p80 = pneg %p74
      %p81 = scmp.eq.s32.totalorder %s23, 1
      %p82 = por %p80, %p81
      %p83 = scmp.ne.s32.totalorder %s75, %s78
      %p84 = scmp.eq.s32.totalorder %s23, 0
      %p85 = por %p83, %p84
      %p86 = scmp.ne.s32.totalorder %s75, %s78
      %p87 = scmp.eq.s32.totalorder %s28, 1
      %p88 = por %p86, %p87
      %p89 = scmp.ne.s32.totalorder %s78, %s79
      %p90 = scmp.eq.s32.totalorder %s28, 0
      %p91 = por %p89, %p90
      %p92 = scmp.ne.s32.totalorder %s78, %s79
      %p93 = scmp.eq.s32.totalorder %s29, 1
      %p94 = por %p92, %p93
      %p96 = scmp.ne.s32.totalorder %s79, %s95
      %p97 = scmp.eq.s32.totalorder %s29, 0
      %p98 = por %p96, %p97
      %s100 = sadd.s32 %s99, 1
      %p103 = scmp.eq.s32.totalorder %s23, 1
      %p104 = scmp.ne.s32.totalorder %s99, %s101
      %p105 = scmp.eq.s32.totalorder %s23, 0
      %p106 = por %p104, %p105
      %p107 = scmp.ne.s32.totalorder %s99, %s101
      %p108 = scmp.eq.s32.totalorder %s28, 1
      %p109 = por %p107, %p108
      %p110 = scmp.ne.s32.totalorder %s101, %s102
      %p111 = scmp.eq.s32.totalorder %s28, 0
      %p112 = por %p110, %p111
      %p113 = scmp.ne.s32.totalorder %s101, %s102
      %p114 = scmp.eq.s32.totalorder %s29, 1
      %p115 = por %p113, %p114
      %p117 = scmp.ne.s32.totalorder %s102, %s116
      %p118 = scmp.eq.s32.totalorder %s29, 0
      %p119 = por %p117, %p118
      %s120 = ssub.s32 %s30, %s42
      %s121 = ssub.s32 %s31, %s38
      %s122 = sor.u32 %s120, %s121
      %p123 = scmp.eq.s32.totalorder %s122, 0
      %s125 = sadd.s32 %s124, 1
      %s126 = scalar_select %p123, %s124, %s125
      %p129 = pneg %p123
      %p130 = scmp.eq.s32.totalorder %s23, 1
      %p131 = por %p129, %p130
      %p132 = scmp.ne.s32.totalorder %s124, %s127
      %p133 = scmp.eq.s32.totalorder %s23, 0
      %p134 = por %p132, %p133
      %p135 = scmp.ne.s32.totalorder %s124, %s127
      %p136 = scmp.eq.s32.totalorder %s28, 1
      %p137 = por %p135, %p136
      %p138 = scmp.ne.s32.totalorder %s127, %s128
      %p139 = scmp.eq.s32.totalorder %s28, 0
      %p140 = por %p138, %p139
      %p141 = scmp.ne.s32.totalorder %s127, %s128
      %p142 = scmp.eq.s32.totalorder %s29, 1
      %p143 = por %p141, %p142
      %p145 = scmp.ne.s32.totalorder %s128, %s144
      %p146 = scmp.eq.s32.totalorder %s29, 0
      %p147 = por %p145, %p146
      %s148 = ssub.s32 %s30, %s42
      %s149 = ssub.s32 %s31, %s38
      %s150 = sor.u32 %s148, %s149
      %p151 = scmp.eq.s32.totalorder %s150, 0
      %s153 = sadd.s32 %s152, 1
      %s154 = scalar_select %p151, %s152, %s153
      %p157 = pneg %p151
      %p158 = scmp.eq.s32.totalorder %s23, 1
      %p159 = por %p157, %p158
      %p160 = scmp.ne.s32.totalorder %s152, %s155
      %p161 = scmp.eq.s32.totalorder %s23, 0
      %p162 = por %p160, %p161
      %p163 = scmp.ne.s32.totalorder %s152, %s155
      %p164 = scmp.eq.s32.totalorder %s28, 1
      %p165 = por %p163, %p164
      %p166 = scmp.ne.s32.totalorder %s155, %s156
      %p167 = scmp.eq.s32.totalorder %s28, 0
      %p168 = por %p166, %p167
      %p169 = scmp.ne.s32.totalorder %s155, %s156
      %p170 = scmp.eq.s32.totalorder %s29, 1
      %p171 = por %p169, %p170
      %p173 = scmp.ne.s32.totalorder %s156, %s172
      %p174 = scmp.eq.s32.totalorder %s29, 0
      %p175 = por %p173, %p174
      %p176 = scmp.le.s32.totalorder 1, %s23
      %p177 = scmp.lt.s32.totalorder %s23, 3
      %p178 = pnand %p176, %p177
      %p179 = pneg %p178
      // Predicated region
      $region9: #{cnn_block.2} parent=5 // pred_check
        _
      $region10: #{cnn_block.2} parent=5 // pred_check_branch
        %181 = sbr.rel (%p178) target = $region12
      $region11: #{cnn_block.2} parent=5 // pred_region
        %s182 = ssub.s32 %s23, 1
        // Predicated region
        $region13: #{cnn_block.2} parent=11 // pred_check
          %p183 = pneg %p112
        $region14: #{cnn_block.2} parent=11 // pred_check_branch
          %185 = sbr.rel (%p183) target = $region16
        $region15: #{cnn_block.2} parent=11 // pred_region
          %s187 = ssub.s32 320, 320
          %188 = vsyncadd [#allocation6], %s187
          %s189 = sshll.u32 [#allocation7], 4
          %s190 = int_to_ptr.vmem [resolvable:$true] %s189
          %195 = dma.hbm_to_vmem [thread:$0]  %s2, 320, %s190, [#allocation6], 64, 64, 4
        $region16: #{cnn_block.2} parent=11 // pred_fallthru
          _
      $region12: #{cnn_block.2} parent=5 // pred_fallthru
        _
      %p196 = scmp.lt.s32.totalorder %s23, 2
      // Predicated region
      $region17: #{cnn_block.2} parent=5 // pred_check
        %p197 = pneg %p196
      $region18: #{cnn_block.2} parent=5 // pred_check_branch
        %199 = sbr.rel (%p197) target = $region20
      $region19: #{cnn_block.2} parent=5 // pred_region
        // Predicated region
        $region21: #{cnn_block.2} parent=19 // pred_check
          %p200 = pneg %p57
        $region22: #{cnn_block.2} parent=19 // pred_check_branch
          %202 = sbr.rel (%p200) target = $region24
        $region23: #{cnn_block.2} parent=19 // pred_region
          %s203 = sand.u32 %s47, 1
          %s204 = scalar_lea.sflag [#allocation3], %s203
          %s205 = sand.u32 %s47, 1
          %s206 = smul.addr %s205, 192
          %s207 = scalar_lea.vmem [#allocation2], %s206
          %s208 = smul.u32 16, %s31
          %s210 = ssub.s32 3072, 3072
          %211 = vsyncadd %s204, %s210
          %s212 = smul.addr %s208, 3
          %s213 = smul.addr %s30, 48
          %s214 = sadd.s32 %s212, %s213
          %s215 = smul.addr %s214, 64
          %s216 = scalar_lea.hbm %s0, %s215
          %s217 = sshll.u32 %s207, 4
          %s218 = int_to_ptr.vmem [resolvable:$true] %s217
          %223 = dma.hbm_to_vmem [thread:$0]  %s216, 3072, %s218, %s204, 64, 64, 4
        $region24: #{cnn_block.2} parent=19 // pred_fallthru
          _
        // Predicated region
        $region25: #{cnn_block.2} parent=19 // pred_check
          %p224 = pneg %p85
        $region26: #{cnn_block.2} parent=19 // pred_check_branch
          %226 = sbr.rel (%p224) target = $region28
        $region27: #{cnn_block.2} parent=19 // pred_region
          %s227 = sand.u32 %s23, 1
          %s228 = scalar_lea.sflag [#allocation6], %s227
          %s229 = sand.u32 %s75, 1
          %s230 = smul.addr %s229, 24
          %s231 = scalar_lea.vmem [#allocation5], %s230
          %s233 = ssub.s32 384, 384
          %234 = vsyncadd %s228, %s233
          %s235 = smul.addr %s31, 6
          %s236 = smul.addr %s30, 6
          %s237 = sadd.s32 %s235, %s236
          %s238 = smul.addr %s237, 64
          %s239 = scalar_lea.hbm %s1, %s238
          %s240 = sshll.u32 %s231, 4
          %s241 = int_to_ptr.vmem [resolvable:$true] %s240
          %246 = dma.hbm_to_vmem [thread:$0]  %s239, 384, %s241, %s228, 64, 64, 4
        $region28: #{cnn_block.2} parent=19 // pred_fallthru
          _
      $region20: #{cnn_block.2} parent=5 // pred_fallthru
        _
      %p247 = scmp.le.s32.totalorder 1, %s23
      %p248 = scmp.lt.s32.totalorder %s23, 3
      %p249 = pnand %p247, %p248
      %p250 = pneg %p249
      // Predicated region
      $region29: #{cnn_block.2} parent=5 // pred_check
        _
      $region30: #{cnn_block.2} parent=5 // pred_check_branch
        %252 = sbr.rel (%p249) target = $region32
      $region31: #{cnn_block.2} parent=5 // pred_region
        %s253 = ssub.s32 %s23, 1
        %s254 = sand.u32 %s50, 1
        %s255 = scalar_lea.sflag [#allocation3], %s254
        %s256 = sand.u32 %s50, 1
        %s257 = smul.addr %s256, 192
        %s258 = scalar_lea.vmem [#allocation2], %s257
        // Predicated region
        $region33: #{cnn_block.2} parent=31 // pred_check
          %p259 = pneg %p63
        $region34: #{cnn_block.2} parent=31 // pred_check_branch
          %261 = sbr.rel (%p259) target = $region36
        $region35: #{cnn_block.2} parent=31 // pred_region
          %262 = dma.done %s255, 3072
        $region36: #{cnn_block.2} parent=31 // pred_fallthru
          _
        %s263 = sand.u32 %s28, 1
        %s264 = scalar_lea.sflag [#allocation6], %s263
        %s265 = sand.u32 %s78, 1
        %s266 = smul.addr %s265, 24
        %s267 = scalar_lea.vmem [#allocation5], %s266
        // Predicated region
        $region37: #{cnn_block.2} parent=31 // pred_check
          %p268 = pneg %p91
        $region38: #{cnn_block.2} parent=31 // pred_check_branch
          %270 = sbr.rel (%p268) target = $region40
        $region39: #{cnn_block.2} parent=31 // pred_region
          %271 = dma.done %s264, 384
        $region40: #{cnn_block.2} parent=31 // pred_fallthru
          _
        // Predicated region
        $region41: #{cnn_block.2} parent=31 // pred_check
          %p272 = pneg %p112
        $region42: #{cnn_block.2} parent=31 // pred_check_branch
          %274 = sbr.rel (%p272) target = $region44
        $region43: #{cnn_block.2} parent=31 // pred_region
          %275 = dma.done [#allocation6], 320
        $region44: #{cnn_block.2} parent=31 // pred_fallthru
          _
        %s276 = sand.u32 %s50, 1
        %s277 = scalar_lea.sflag [#allocation3], %s276
        %s278 = sand.u32 %s50, 1
        %s279 = smul.addr %s278, 192
        %s280 = scalar_lea.vmem [#allocation2], %s279
        %p281 = pneg %p63
        %p282 = pneg %p60
        %s283 = sand.u32 %s28, 1
        %s284 = scalar_lea.sflag [#allocation6], %s283
        %s285 = sand.u32 %s78, 1
        %s286 = smul.addr %s285, 24
        %s287 = scalar_lea.vmem [#allocation5], %s286
        %p288 = pneg %p91
        %p289 = pneg %p88
        %p290 = pneg %p112
        %p291 = pneg %p109
        %p292 = pneg %p140
        %p293 = pneg %p137
        %s294 = sand.u32 %s127, 1
        %s295 = scalar_lea.sflag [#allocation4], %s294
        %s296 = sand.u32 %s127, 1
        %s297 = smul.addr %s296, 128
        %s298 = scalar_lea.vmem [#allocation8], %s297
        %p299 = pneg %p168
        %p300 = pneg %p165
        %s301 = sand.u32 %s155, 1
        %s302 = scalar_lea.sflag [#allocation10], %s301
        %s303 = sand.u32 %s155, 1
        %s304 = smul.addr %s303, 2
        %s305 = scalar_lea.vmem [#allocation9], %s304
        %s306 = smul.u32 16, %s33
        %s307 = smul.u32 16, %s33
        %v309 = vld [vmem:[%s267] sm:$0xf]
        %v310 = vld [vmem:[%s267 + $0x4] sm:$0xf]
        %v311 = vld [vmem:[%s267 + $0x8] sm:$0x1]
        %v312 = vld [vmem:[%s267 + $0xc] sm:$0xf]
        %v313 = vld [vmem:[%s267 + $0x10] sm:$0xf]
        %v314 = vld [vmem:[%s267 + $0x14] sm:$0x1]
        %v315 = vld [vmem:[%s258] sm:$0xf]
        %v316 = vld [vmem:[%s258 + $0x4] sm:$0xf]
        %v317 = vld [vmem:[%s258 + $0x8] sm:$0x1]
        %v318 = vld [vmem:[%s258 + $0xc] sm:$0xf]
        %v319 = vld [vmem:[%s258 + $0x10] sm:$0xf]
        %v320 = vld [vmem:[%s258 + $0x14] sm:$0x1]
        %v321 = vld [vmem:[%s258 + $0x18] sm:$0xf]
        %v322 = vld [vmem:[%s258 + $0x1c] sm:$0xf]
        %v323 = vld [vmem:[%s258 + $0x20] sm:$0x1]
        %v324 = vld [vmem:[%s258 + $0x24] sm:$0xf]
        %v325 = vld [vmem:[%s258 + $0x28] sm:$0xf]
        %v326 = vld [vmem:[%s258 + $0x2c] sm:$0x1]
        %v327 = vld [vmem:[%s258 + $0x30] sm:$0xf]
        %v328 = vld [vmem:[%s258 + $0x34] sm:$0xf]
        %v329 = vld [vmem:[%s258 + $0x38] sm:$0x1]
        %v330 = vld [vmem:[%s258 + $0x3c] sm:$0xf]
        %v331 = vld [vmem:[%s258 + $0x40] sm:$0xf]
        %v332 = vld [vmem:[%s258 + $0x44] sm:$0x1]
        %v333 = vld [vmem:[%s258 + $0x48] sm:$0xf]
        %v334 = vld [vmem:[%s258 + $0x4c] sm:$0xf]
        %v335 = vld [vmem:[%s258 + $0x50] sm:$0x1]
        %v336 = vld [vmem:[%s258 + $0x54] sm:$0xf]
        %v337 = vld [vmem:[%s258 + $0x58] sm:$0xf]
        %v338 = vld [vmem:[%s258 + $0x5c] sm:$0x1]
        %v339 = vld [vmem:[%s258 + $0x60] sm:$0xf]
        %v340 = vld [vmem:[%s258 + $0x64] sm:$0xf]
        %v341 = vld [vmem:[%s258 + $0x68] sm:$0x1]
        %v342 = vld [vmem:[%s258 + $0x6c] sm:$0xf]
        %v343 = vld [vmem:[%s258 + $0x70] sm:$0xf]
        %v344 = vld [vmem:[%s258 + $0x74] sm:$0x1]
        %v345 = vld [vmem:[%s258 + $0x78] sm:$0xf]
        %v346 = vld [vmem:[%s258 + $0x7c] sm:$0xf]
        %v347 = vld [vmem:[%s258 + $0x80] sm:$0x1]
        %v348 = vld [vmem:[%s258 + $0x84] sm:$0xf]
        %v349 = vld [vmem:[%s258 + $0x88] sm:$0xf]
        %v350 = vld [vmem:[%s258 + $0x8c] sm:$0x1]
        %v351 = vld [vmem:[%s258 + $0x90] sm:$0xf]
        %v352 = vld [vmem:[%s258 + $0x94] sm:$0xf]
        %v353 = vld [vmem:[%s258 + $0x98] sm:$0x1]
        %v354 = vld [vmem:[%s258 + $0x9c] sm:$0xf]
        %v355 = vld [vmem:[%s258 + $0xa0] sm:$0xf]
        %v356 = vld [vmem:[%s258 + $0xa4] sm:$0x1]
        %v357 = vld [vmem:[%s258 + $0xa8] sm:$0xf]
        %v358 = vld [vmem:[%s258 + $0xac] sm:$0xf]
        %v359 = vld [vmem:[%s258 + $0xb0] sm:$0x1]
        %v360 = vld [vmem:[%s258 + $0xb4] sm:$0xf]
        %v361 = vld [vmem:[%s258 + $0xb8] sm:$0xf]
        %v362 = vld [vmem:[%s258 + $0xbc] sm:$0x1]
        %v395 = vunpack.c.l.b16 %v309
        %v396 = vunpack.c.l.b16 %v310
        %v397 = vunpack.c.l.b16 %v315
        %v398 = vunpack.c.l.b16 %v316
        %v399 = vunpack.c.l.b16 %v318
        %v400 = vunpack.c.l.b16 %v319
        %v401 = vunpack.c.l.b16 %v321
        %v402 = vunpack.c.l.b16 %v322
        %v403 = vunpack.c.l.b16 %v324
        %v404 = vunpack.c.l.b16 %v325
        %v405 = vunpack.c.l.b16 %v327
        %v406 = vunpack.c.l.b16 %v328
        %v407 = vunpack.c.l.b16 %v330
        %v408 = vunpack.c.l.b16 %v331
        %v409 = vunpack.c.l.b16 %v333
        %v410 = vunpack.c.l.b16 %v334
        %v411 = vunpack.c.l.b16 %v336
        %v412 = vunpack.c.l.b16 %v337
        %v413 = vunpack.c.l.b16 %v339
        %v414 = vunpack.c.l.b16 %v340
        %v415 = vunpack.c.l.b16 %v342
        %v416 = vunpack.c.l.b16 %v343
        %v417 = vunpack.c.l.b16 %v345
        %v418 = vunpack.c.l.b16 %v346
        %v419 = vunpack.c.l.b16 %v348
        %v420 = vunpack.c.l.b16 %v349
        %v421 = vunpack.c.l.b16 %v351
        %v422 = vunpack.c.l.b16 %v352
        %v423 = vunpack.c.l.b16 %v354
        %v424 = vunpack.c.l.b16 %v355
        %v425 = vunpack.c.l.b16 %v357
        %v426 = vunpack.c.l.b16 %v358
        %v427 = vpack.c.b16 %v396, %v395
        %v428 = vpack.c.b16 %v398, %v397
        %v429 = vpack.c.b16 %v400, %v399
        %v430 = vpack.c.b16 %v402, %v401
        %v431 = vpack.c.b16 %v404, %v403
        %v432 = vpack.c.b16 %v406, %v405
        %v433 = vpack.c.b16 %v408, %v407
        %v434 = vpack.c.b16 %v410, %v409
        %v435 = vpack.c.b16 %v412, %v411
        %v436 = vpack.c.b16 %v414, %v413
        %v437 = vpack.c.b16 %v416, %v415
        %v438 = vpack.c.b16 %v418, %v417
        %v439 = vpack.c.b16 %v420, %v419
        %v440 = vpack.c.b16 %v422, %v421
        %v441 = vpack.c.b16 %v424, %v423
        %v442 = vpack.c.b16 %v426, %v425
        %v459 = vunpack.c.l.b16 %v311
        %v460 = vunpack.c.l.b16 %v317
        %v461 = vunpack.c.l.b16 %v320
        %v462 = vunpack.c.l.b16 %v323
        %v463 = vunpack.c.l.b16 %v326
        %v464 = vunpack.c.l.b16 %v329
        %v465 = vunpack.c.l.b16 %v332
        %v466 = vunpack.c.l.b16 %v335
        %v467 = vunpack.c.l.b16 %v338
        %v468 = vunpack.c.l.b16 %v341
        %v469 = vunpack.c.l.b16 %v344
        %v470 = vunpack.c.l.b16 %v347
        %v471 = vunpack.c.l.b16 %v350
        %v472 = vunpack.c.l.b16 %v353
        %v473 = vunpack.c.l.b16 %v356
        %v474 = vunpack.c.l.b16 %v359
        %v475 = vpack.c.b16 %v459, %v459
        %v476 = vpack.c.b16 %v460, %v460
        %v477 = vpack.c.b16 %v461, %v461
        %v478 = vpack.c.b16 %v462, %v462
        %v479 = vpack.c.b16 %v463, %v463
        %v480 = vpack.c.b16 %v464, %v464
        %v481 = vpack.c.b16 %v465, %v465
        %v482 = vpack.c.b16 %v466, %v466
        %v483 = vpack.c.b16 %v467, %v467
        %v484 = vpack.c.b16 %v468, %v468
        %v485 = vpack.c.b16 %v469, %v469
        %v486 = vpack.c.b16 %v470, %v470
        %v487 = vpack.c.b16 %v471, %v471
        %v488 = vpack.c.b16 %v472, %v472
        %v489 = vpack.c.b16 %v473, %v473
        %v490 = vpack.c.b16 %v474, %v474
        %vm491 = vsmask.f32 7424
        %v493 = vshrl.u32 %v427, 16
        %v495 = vshll.u32 %v427, 16
        %v497 = vrot.slane %v495, 1
        %v498 = vor.u32 %v493, %v497
        %v500 = vshll.u32 %v475, 16
        %v502 = vrot.slane %v500, 1
        %v503 = vsel %vm491, %v498, %v502
        %v505 = vshrl.u32 %v428, 16
        %v507 = vshll.u32 %v428, 16
        %v509 = vrot.slane %v507, 1
        %v510 = vor.u32 %v505, %v509
        %v512 = vshll.u32 %v476, 16
        %v514 = vrot.slane %v512, 1
        %v515 = vsel %vm491, %v510, %v514
        %v517 = vshrl.u32 %v429, 16
        %v519 = vshll.u32 %v429, 16
        %v521 = vrot.slane %v519, 1
        %v522 = vor.u32 %v517, %v521
        %v524 = vshll.u32 %v477, 16
        %v526 = vrot.slane %v524, 1
        %v527 = vsel %vm491, %v522, %v526
        %v529 = vshrl.u32 %v430, 16
        %v531 = vshll.u32 %v430, 16
        %v533 = vrot.slane %v531, 1
        %v534 = vor.u32 %v529, %v533
        %v536 = vshll.u32 %v478, 16
        %v538 = vrot.slane %v536, 1
        %v539 = vsel %vm491, %v534, %v538
        %v541 = vshrl.u32 %v431, 16
        %v543 = vshll.u32 %v431, 16
        %v545 = vrot.slane %v543, 1
        %v546 = vor.u32 %v541, %v545
        %v548 = vshll.u32 %v479, 16
        %v550 = vrot.slane %v548, 1
        %v551 = vsel %vm491, %v546, %v550
        %v553 = vshrl.u32 %v432, 16
        %v555 = vshll.u32 %v432, 16
        %v557 = vrot.slane %v555, 1
        %v558 = vor.u32 %v553, %v557
        %v560 = vshll.u32 %v480, 16
        %v562 = vrot.slane %v560, 1
        %v563 = vsel %vm491, %v558, %v562
        %v565 = vshrl.u32 %v433, 16
        %v567 = vshll.u32 %v433, 16
        %v569 = vrot.slane %v567, 1
        %v570 = vor.u32 %v565, %v569
        %v572 = vshll.u32 %v481, 16
        %v574 = vrot.slane %v572, 1
        %v575 = vsel %vm491, %v570, %v574
        %v577 = vshrl.u32 %v434, 16
        %v579 = vshll.u32 %v434, 16
        %v581 = vrot.slane %v579, 1
        %v582 = vor.u32 %v577, %v581
        %v584 = vshll.u32 %v482, 16
        %v586 = vrot.slane %v584, 1
        %v587 = vsel %vm491, %v582, %v586
        %v589 = vshrl.u32 %v435, 16
        %v591 = vshll.u32 %v435, 16
        %v593 = vrot.slane %v591, 1
        %v594 = vor.u32 %v589, %v593
        %v596 = vshll.u32 %v483, 16
        %v598 = vrot.slane %v596, 1
        %v599 = vsel %vm491, %v594, %v598
        %v601 = vshrl.u32 %v436, 16
        %v603 = vshll.u32 %v436, 16
        %v605 = vrot.slane %v603, 1
        %v606 = vor.u32 %v601, %v605
        %v608 = vshll.u32 %v484, 16
        %v610 = vrot.slane %v608, 1
        %v611 = vsel %vm491, %v606, %v610
        %v613 = vshrl.u32 %v437, 16
        %v615 = vshll.u32 %v437, 16
        %v617 = vrot.slane %v615, 1
        %v618 = vor.u32 %v613, %v617
        %v620 = vshll.u32 %v485, 16
        %v622 = vrot.slane %v620, 1
        %v623 = vsel %vm491, %v618, %v622
        %v625 = vshrl.u32 %v438, 16
        %v627 = vshll.u32 %v438, 16
        %v629 = vrot.slane %v627, 1
        %v630 = vor.u32 %v625, %v629
        %v632 = vshll.u32 %v486, 16
        %v634 = vrot.slane %v632, 1
        %v635 = vsel %vm491, %v630, %v634
        %v637 = vshrl.u32 %v439, 16
        %v639 = vshll.u32 %v439, 16
        %v641 = vrot.slane %v639, 1
        %v642 = vor.u32 %v637, %v641
        %v644 = vshll.u32 %v487, 16
        %v646 = vrot.slane %v644, 1
        %v647 = vsel %vm491, %v642, %v646
        %v649 = vshrl.u32 %v440, 16
        %v651 = vshll.u32 %v440, 16
        %v653 = vrot.slane %v651, 1
        %v654 = vor.u32 %v649, %v653
        %v656 = vshll.u32 %v488, 16
        %v658 = vrot.slane %v656, 1
        %v659 = vsel %vm491, %v654, %v658
        %v661 = vshrl.u32 %v441, 16
        %v663 = vshll.u32 %v441, 16
        %v665 = vrot.slane %v663, 1
        %v666 = vor.u32 %v661, %v665
        %v668 = vshll.u32 %v489, 16
        %v670 = vrot.slane %v668, 1
        %v671 = vsel %vm491, %v666, %v670
        %v673 = vshrl.u32 %v442, 16
        %v675 = vshll.u32 %v442, 16
        %v677 = vrot.slane %v675, 1
        %v678 = vor.u32 %v673, %v677
        %v680 = vshll.u32 %v490, 16
        %v682 = vrot.slane %v680, 1
        %v683 = vsel %vm491, %v678, %v682
        %684 = vrot.lane.b32.xlu0 %v503, 4
        %v685 = vpop.permute.xlu0 %684
        %686 = vrot.lane.b32.xlu0 %v515, 4
        %v687 = vpop.permute.xlu0 %686
        %688 = vrot.lane.b32.xlu0 %v527, 4
        %v689 = vpop.permute.xlu0 %688
        %690 = vrot.lane.b32.xlu0 %v539, 4
        %v691 = vpop.permute.xlu0 %690
        %692 = vrot.lane.b32.xlu0 %v551, 4
        %v693 = vpop.permute.xlu0 %692
        %694 = vrot.lane.b32.xlu0 %v563, 4
        %v695 = vpop.permute.xlu0 %694
        %696 = vrot.lane.b32.xlu0 %v575, 4
        %v697 = vpop.permute.xlu0 %696
        %698 = vrot.lane.b32.xlu0 %v587, 4
        %v699 = vpop.permute.xlu0 %698
        %700 = vrot.lane.b32.xlu0 %v599, 4
        %v701 = vpop.permute.xlu0 %700
        %702 = vrot.lane.b32.xlu0 %v611, 4
        %v703 = vpop.permute.xlu0 %702
        %704 = vrot.lane.b32.xlu0 %v623, 4
        %v705 = vpop.permute.xlu0 %704
        %706 = vrot.lane.b32.xlu0 %v635, 4
        %v707 = vpop.permute.xlu0 %706
        %708 = vrot.lane.b32.xlu0 %v647, 4
        %v709 = vpop.permute.xlu0 %708
        %710 = vrot.lane.b32.xlu0 %v659, 4
        %v711 = vpop.permute.xlu0 %710
        %712 = vrot.lane.b32.xlu0 %v671, 4
        %v713 = vpop.permute.xlu0 %712
        %714 = vrot.lane.b32.xlu0 %v683, 4
        %v715 = vpop.permute.xlu0 %714
        %vm716 = vcmask 1046528
        %v717 = vrot.slane %v427, 1
        %v718 = vrot.slane %v475, 1
        %v719 = vsel %vm716, %v717, %v718
        %v720 = vrot.slane %v428, 1
        %v721 = vrot.slane %v476, 1
        %v722 = vsel %vm716, %v720, %v721
        %v723 = vrot.slane %v429, 1
        %v724 = vrot.slane %v477, 1
        %v725 = vsel %vm716, %v723, %v724
        %v726 = vrot.slane %v430, 1
        %v727 = vrot.slane %v478, 1
        %v728 = vsel %vm716, %v726, %v727
        %v729 = vrot.slane %v431, 1
        %v730 = vrot.slane %v479, 1
        %v731 = vsel %vm716, %v729, %v730
        %v732 = vrot.slane %v432, 1
        %v733 = vrot.slane %v480, 1
        %v734 = vsel %vm716, %v732, %v733
        %v735 = vrot.slane %v433, 1
        %v736 = vrot.slane %v481, 1
        %v737 = vsel %vm716, %v735, %v736
        %v738 = vrot.slane %v434, 1
        %v739 = vrot.slane %v482, 1
        %v740 = vsel %vm716, %v738, %v739
        %v741 = vrot.slane %v435, 1
        %v742 = vrot.slane %v483, 1
        %v743 = vsel %vm716, %v741, %v742
        %v744 = vrot.slane %v436, 1
        %v745 = vrot.slane %v484, 1
        %v746 = vsel %vm716, %v744, %v745
        %v747 = vrot.slane %v437, 1
        %v748 = vrot.slane %v485, 1
        %v749 = vsel %vm716, %v747, %v748
        %v750 = vrot.slane %v438, 1
        %v751 = vrot.slane %v486, 1
        %v752 = vsel %vm716, %v750, %v751
        %v753 = vrot.slane %v439, 1
        %v754 = vrot.slane %v487, 1
        %v755 = vsel %vm716, %v753, %v754
        %v756 = vrot.slane %v440, 1
        %v757 = vrot.slane %v488, 1
        %v758 = vsel %vm716, %v756, %v757
        %v759 = vrot.slane %v441, 1
        %v760 = vrot.slane %v489, 1
        %v761 = vsel %vm716, %v759, %v760
        %v762 = vrot.slane %v442, 1
        %v763 = vrot.slane %v490, 1
        %v764 = vsel %vm716, %v762, %v763
        %765 = vrot.lane.b32.xlu0 %v719, 8
        %v766 = vpop.permute.xlu0 %765
        %767 = vrot.lane.b32.xlu0 %v722, 8
        %v768 = vpop.permute.xlu0 %767
        %769 = vrot.lane.b32.xlu0 %v725, 8
        %v770 = vpop.permute.xlu0 %769
        %771 = vrot.lane.b32.xlu0 %v728, 8
        %v772 = vpop.permute.xlu0 %771
        %773 = vrot.lane.b32.xlu0 %v731, 8
        %v774 = vpop.permute.xlu0 %773
        %775 = vrot.lane.b32.xlu0 %v734, 8
        %v776 = vpop.permute.xlu0 %775
        %777 = vrot.lane.b32.xlu0 %v737, 8
        %v778 = vpop.permute.xlu0 %777
        %779 = vrot.lane.b32.xlu0 %v740, 8
        %v780 = vpop.permute.xlu0 %779
        %781 = vrot.lane.b32.xlu0 %v743, 8
        %v782 = vpop.permute.xlu0 %781
        %783 = vrot.lane.b32.xlu0 %v746, 8
        %v784 = vpop.permute.xlu0 %783
        %785 = vrot.lane.b32.xlu0 %v749, 8
        %v786 = vpop.permute.xlu0 %785
        %787 = vrot.lane.b32.xlu0 %v752, 8
        %v788 = vpop.permute.xlu0 %787
        %789 = vrot.lane.b32.xlu0 %v755, 8
        %v790 = vpop.permute.xlu0 %789
        %791 = vrot.lane.b32.xlu0 %v758, 8
        %v792 = vpop.permute.xlu0 %791
        %793 = vrot.lane.b32.xlu0 %v761, 8
        %v794 = vpop.permute.xlu0 %793
        %795 = vrot.lane.b32.xlu0 %v764, 8
        %v796 = vpop.permute.xlu0 %795
        %v799 = vunpack.c.l.b16 %v360
        %v800 = vunpack.c.l.b16 %v361
        %v801 = vpack.c.b16 %v800, %v799
        %802 = vrot.lane.b32.xlu0 %v428, 12
        %v803 = vpop.permute.xlu0 %802
        %804 = vrot.lane.b32.xlu0 %v429, 12
        %v805 = vpop.permute.xlu0 %804
        %806 = vrot.lane.b32.xlu0 %v430, 12
        %v807 = vpop.permute.xlu0 %806
        %808 = vrot.lane.b32.xlu0 %v431, 12
        %v809 = vpop.permute.xlu0 %808
        %810 = vrot.lane.b32.xlu0 %v432, 12
        %v811 = vpop.permute.xlu0 %810
        %812 = vrot.lane.b32.xlu0 %v433, 12
        %v813 = vpop.permute.xlu0 %812
        %814 = vrot.lane.b32.xlu0 %v434, 12
        %v815 = vpop.permute.xlu0 %814
        %816 = vrot.lane.b32.xlu0 %v435, 12
        %v817 = vpop.permute.xlu0 %816
        %818 = vrot.lane.b32.xlu0 %v436, 12
        %v819 = vpop.permute.xlu0 %818
        %820 = vrot.lane.b32.xlu0 %v437, 12
        %v821 = vpop.permute.xlu0 %820
        %822 = vrot.lane.b32.xlu0 %v438, 12
        %v823 = vpop.permute.xlu0 %822
        %824 = vrot.lane.b32.xlu0 %v439, 12
        %v825 = vpop.permute.xlu0 %824
        %826 = vrot.lane.b32.xlu0 %v440, 12
        %v827 = vpop.permute.xlu0 %826
        %828 = vrot.lane.b32.xlu0 %v441, 12
        %v829 = vpop.permute.xlu0 %828
        %830 = vrot.lane.b32.xlu0 %v442, 12
        %v831 = vpop.permute.xlu0 %830
        %832 = vrot.lane.b32.xlu0 %v801, 12
        %v833 = vpop.permute.xlu0 %832
        %v835 = vunpack.c.l.b16 %v362
        %v836 = vpack.c.b16 %v835, %v835
        %v838 = vshrl.u32 %v801, 16
        %v840 = vshll.u32 %v801, 16
        %v842 = vrot.slane %v840, 1
        %v843 = vor.u32 %v838, %v842
        %v845 = vshll.u32 %v836, 16
        %v847 = vrot.slane %v845, 1
        %v848 = vsel %vm491, %v843, %v847
        %849 = vrot.lane.b32.xlu0 %v515, 16
        %v850 = vpop.permute.xlu0 %849
        %851 = vrot.lane.b32.xlu0 %v527, 16
        %v852 = vpop.permute.xlu0 %851
        %853 = vrot.lane.b32.xlu0 %v539, 16
        %v854 = vpop.permute.xlu0 %853
        %855 = vrot.lane.b32.xlu0 %v551, 16
        %v856 = vpop.permute.xlu0 %855
        %857 = vrot.lane.b32.xlu0 %v563, 16
        %v858 = vpop.permute.xlu0 %857
        %859 = vrot.lane.b32.xlu0 %v575, 16
        %v860 = vpop.permute.xlu0 %859
        %861 = vrot.lane.b32.xlu0 %v587, 16
        %v862 = vpop.permute.xlu0 %861
        %863 = vrot.lane.b32.xlu0 %v599, 16
        %v864 = vpop.permute.xlu0 %863
        %865 = vrot.lane.b32.xlu0 %v611, 16
        %v866 = vpop.permute.xlu0 %865
        %867 = vrot.lane.b32.xlu0 %v623, 16
        %v868 = vpop.permute.xlu0 %867
        %869 = vrot.lane.b32.xlu0 %v635, 16
        %v870 = vpop.permute.xlu0 %869
        %871 = vrot.lane.b32.xlu0 %v647, 16
        %v872 = vpop.permute.xlu0 %871
        %873 = vrot.lane.b32.xlu0 %v659, 16
        %v874 = vpop.permute.xlu0 %873
        %875 = vrot.lane.b32.xlu0 %v671, 16
        %v876 = vpop.permute.xlu0 %875
        %877 = vrot.lane.b32.xlu0 %v683, 16
        %v878 = vpop.permute.xlu0 %877
        %879 = vrot.lane.b32.xlu0 %v848, 16
        %v880 = vpop.permute.xlu0 %879
        %v881 = vrot.slane %v801, 1
        %v882 = vrot.slane %v836, 1
        %v883 = vsel %vm716, %v881, %v882
        %884 = vrot.lane.b32.xlu0 %v722, 20
        %v885 = vpop.permute.xlu0 %884
        %886 = vrot.lane.b32.xlu0 %v725, 20
        %v887 = vpop.permute.xlu0 %886
        %888 = vrot.lane.b32.xlu0 %v728, 20
        %v889 = vpop.permute.xlu0 %888
        %890 = vrot.lane.b32.xlu0 %v731, 20
        %v891 = vpop.permute.xlu0 %890
        %892 = vrot.lane.b32.xlu0 %v734, 20
        %v893 = vpop.permute.xlu0 %892
        %894 = vrot.lane.b32.xlu0 %v737, 20
        %v895 = vpop.permute.xlu0 %894
        %896 = vrot.lane.b32.xlu0 %v740, 20
        %v897 = vpop.permute.xlu0 %896
        %898 = vrot.lane.b32.xlu0 %v743, 20
        %v899 = vpop.permute.xlu0 %898
        %900 = vrot.lane.b32.xlu0 %v746, 20
        %v901 = vpop.permute.xlu0 %900
        %902 = vrot.lane.b32.xlu0 %v749, 20
        %v903 = vpop.permute.xlu0 %902
        %904 = vrot.lane.b32.xlu0 %v752, 20
        %v905 = vpop.permute.xlu0 %904
        %906 = vrot.lane.b32.xlu0 %v755, 20
        %v907 = vpop.permute.xlu0 %906
        %908 = vrot.lane.b32.xlu0 %v758, 20
        %v909 = vpop.permute.xlu0 %908
        %910 = vrot.lane.b32.xlu0 %v761, 20
        %v911 = vpop.permute.xlu0 %910
        %912 = vrot.lane.b32.xlu0 %v764, 20
        %v913 = vpop.permute.xlu0 %912
        %914 = vrot.lane.b32.xlu0 %v883, 20
        %v915 = vpop.permute.xlu0 %914
        %v918 = vunpack.c.l.b16 %v312
        %v919 = vunpack.c.l.b16 %v313
        %v920 = vpack.c.b16 %v919, %v918
        %921 = vrot.lane.b32.xlu0 %v429, 24
        %v922 = vpop.permute.xlu0 %921
        %923 = vrot.lane.b32.xlu0 %v430, 24
        %v924 = vpop.permute.xlu0 %923
        %925 = vrot.lane.b32.xlu0 %v431, 24
        %v926 = vpop.permute.xlu0 %925
        %927 = vrot.lane.b32.xlu0 %v432, 24
        %v928 = vpop.permute.xlu0 %927
        %929 = vrot.lane.b32.xlu0 %v433, 24
        %v930 = vpop.permute.xlu0 %929
        %931 = vrot.lane.b32.xlu0 %v434, 24
        %v932 = vpop.permute.xlu0 %931
        %933 = vrot.lane.b32.xlu0 %v435, 24
        %v934 = vpop.permute.xlu0 %933
        %935 = vrot.lane.b32.xlu0 %v436, 24
        %v936 = vpop.permute.xlu0 %935
        %937 = vrot.lane.b32.xlu0 %v437, 24
        %v938 = vpop.permute.xlu0 %937
        %939 = vrot.lane.b32.xlu0 %v438, 24
        %v940 = vpop.permute.xlu0 %939
        %941 = vrot.lane.b32.xlu0 %v439, 24
        %v942 = vpop.permute.xlu0 %941
        %943 = vrot.lane.b32.xlu0 %v440, 24
        %v944 = vpop.permute.xlu0 %943
        %945 = vrot.lane.b32.xlu0 %v441, 24
        %v946 = vpop.permute.xlu0 %945
        %947 = vrot.lane.b32.xlu0 %v442, 24
        %v948 = vpop.permute.xlu0 %947
        %949 = vrot.lane.b32.xlu0 %v801, 24
        %v950 = vpop.permute.xlu0 %949
        %951 = vrot.lane.b32.xlu0 %v920, 24
        %v952 = vpop.permute.xlu0 %951
        %v954 = vunpack.c.l.b16 %v314
        %v955 = vpack.c.b16 %v954, %v954
        %v957 = vshrl.u32 %v920, 16
        %v959 = vshll.u32 %v920, 16
        %v961 = vrot.slane %v959, 1
        %v962 = vor.u32 %v957, %v961
        %v964 = vshll.u32 %v955, 16
        %v966 = vrot.slane %v964, 1
        %v967 = vsel %vm491, %v962, %v966
        %968 = vrot.lane.b32.xlu0 %v527, 28
        %v969 = vpop.permute.xlu0 %968
        %970 = vrot.lane.b32.xlu0 %v539, 28
        %v971 = vpop.permute.xlu0 %970
        %972 = vrot.lane.b32.xlu0 %v551, 28
        %v973 = vpop.permute.xlu0 %972
        %974 = vrot.lane.b32.xlu0 %v563, 28
        %v975 = vpop.permute.xlu0 %974
        %976 = vrot.lane.b32.xlu0 %v575, 28
        %v977 = vpop.permute.xlu0 %976
        %978 = vrot.lane.b32.xlu0 %v587, 28
        %v979 = vpop.permute.xlu0 %978
        %980 = vrot.lane.b32.xlu0 %v599, 28
        %v981 = vpop.permute.xlu0 %980
        %982 = vrot.lane.b32.xlu0 %v611, 28
        %v983 = vpop.permute.xlu0 %982
        %984 = vrot.lane.b32.xlu0 %v623, 28
        %v985 = vpop.permute.xlu0 %984
        %986 = vrot.lane.b32.xlu0 %v635, 28
        %v987 = vpop.permute.xlu0 %986
        %988 = vrot.lane.b32.xlu0 %v647, 28
        %v989 = vpop.permute.xlu0 %988
        %990 = vrot.lane.b32.xlu0 %v659, 28
        %v991 = vpop.permute.xlu0 %990
        %992 = vrot.lane.b32.xlu0 %v671, 28
        %v993 = vpop.permute.xlu0 %992
        %994 = vrot.lane.b32.xlu0 %v683, 28
        %v995 = vpop.permute.xlu0 %994
        %996 = vrot.lane.b32.xlu0 %v848, 28
        %v997 = vpop.permute.xlu0 %996
        %998 = vrot.lane.b32.xlu0 %v967, 28
        %v999 = vpop.permute.xlu0 %998
        %v1000 = vrot.slane %v920, 1
        %v1001 = vrot.slane %v955, 1
        %v1002 = vsel %vm716, %v1000, %v1001
        %1003 = vrot.lane.b32.xlu0 %v725, 32
        %v1004 = vpop.permute.xlu0 %1003
        %1005 = vrot.lane.b32.xlu0 %v728, 32
        %v1006 = vpop.permute.xlu0 %1005
        %1007 = vrot.lane.b32.xlu0 %v731, 32
        %v1008 = vpop.permute.xlu0 %1007
        %1009 = vrot.lane.b32.xlu0 %v734, 32
        %v1010 = vpop.permute.xlu0 %1009
        %1011 = vrot.lane.b32.xlu0 %v737, 32
        %v1012 = vpop.permute.xlu0 %1011
        %1013 = vrot.lane.b32.xlu0 %v740, 32
        %v1014 = vpop.permute.xlu0 %1013
        %1015 = vrot.lane.b32.xlu0 %v743, 32
        %v1016 = vpop.permute.xlu0 %1015
        %1017 = vrot.lane.b32.xlu0 %v746, 32
        %v1018 = vpop.permute.xlu0 %1017
        %1019 = vrot.lane.b32.xlu0 %v749, 32
        %v1020 = vpop.permute.xlu0 %1019
        %1021 = vrot.lane.b32.xlu0 %v752, 32
        %v1022 = vpop.permute.xlu0 %1021
        %1023 = vrot.lane.b32.xlu0 %v755, 32
        %v1024 = vpop.permute.xlu0 %1023
        %1025 = vrot.lane.b32.xlu0 %v758, 32
        %v1026 = vpop.permute.xlu0 %1025
        %1027 = vrot.lane.b32.xlu0 %v761, 32
        %v1028 = vpop.permute.xlu0 %1027
        %1029 = vrot.lane.b32.xlu0 %v764, 32
        %v1030 = vpop.permute.xlu0 %1029
        %1031 = vrot.lane.b32.xlu0 %v883, 32
        %v1032 = vpop.permute.xlu0 %1031
        %1033 = vrot.lane.b32.xlu0 %v1002, 32
        %v1034 = vpop.permute.xlu0 %1033
        %vm1035 = vcmask 31744
        %v1037 = vsel %vm1035, %v427, %v685
        %v1039 = vsel %vm1035, %v428, %v687
        %v1041 = vsel %vm1035, %v429, %v689
        %v1043 = vsel %vm1035, %v430, %v691
        %v1045 = vsel %vm1035, %v431, %v693
        %v1047 = vsel %vm1035, %v432, %v695
        %v1049 = vsel %vm1035, %v433, %v697
        %v1051 = vsel %vm1035, %v434, %v699
        %v1053 = vsel %vm1035, %v435, %v701
        %v1055 = vsel %vm1035, %v436, %v703
        %v1057 = vsel %vm1035, %v437, %v705
        %v1059 = vsel %vm1035, %v438, %v707
        %v1061 = vsel %vm1035, %v439, %v709
        %v1063 = vsel %vm1035, %v440, %v711
        %v1065 = vsel %vm1035, %v441, %v713
        %v1067 = vsel %vm1035, %v442, %v715
        %vm1068 = vcmask 64512
        %v1070 = vsel %vm1068, %v1037, %v766
        %v1072 = vsel %vm1068, %v1039, %v768
        %v1074 = vsel %vm1068, %v1041, %v770
        %v1076 = vsel %vm1068, %v1043, %v772
        %v1078 = vsel %vm1068, %v1045, %v774
        %v1080 = vsel %vm1068, %v1047, %v776
        %v1082 = vsel %vm1068, %v1049, %v778
        %v1084 = vsel %vm1068, %v1051, %v780
        %v1086 = vsel %vm1068, %v1053, %v782
        %v1088 = vsel %vm1068, %v1055, %v784
        %v1090 = vsel %vm1068, %v1057, %v786
        %v1092 = vsel %vm1068, %v1059, %v788
        %v1094 = vsel %vm1068, %v1061, %v790
        %v1096 = vsel %vm1068, %v1063, %v792
        %v1098 = vsel %vm1068, %v1065, %v794
        %v1100 = vsel %vm1068, %v1067, %v796
        %vm1101 = vcmask 97280
        %v1103 = vsel %vm1101, %v1070, %v803
        %v1105 = vsel %vm1101, %v1072, %v805
        %v1107 = vsel %vm1101, %v1074, %v807
        %v1109 = vsel %vm1101, %v1076, %v809
        %v1111 = vsel %vm1101, %v1078, %v811
        %v1113 = vsel %vm1101, %v1080, %v813
        %v1115 = vsel %vm1101, %v1082, %v815
        %v1117 = vsel %vm1101, %v1084, %v817
        %v1119 = vsel %vm1101, %v1086, %v819
        %v1121 = vsel %vm1101, %v1088, %v821
        %v1123 = vsel %vm1101, %v1090, %v823
        %v1125 = vsel %vm1101, %v1092, %v825
        %v1127 = vsel %vm1101, %v1094, %v827
        %v1129 = vsel %vm1101, %v1096, %v829
        %v1131 = vsel %vm1101, %v1098, %v831
        %v1133 = vsel %vm1101, %v1100, %v833
        %vm1134 = vcmask 130048
        %v1136 = vsel %vm1134, %v1103, %v850
        %v1138 = vsel %vm1134, %v1105, %v852
        %v1140 = vsel %vm1134, %v1107, %v854
        %v1142 = vsel %vm1134, %v1109, %v856
        %v1144 = vsel %vm1134, %v1111, %v858
        %v1146 = vsel %vm1134, %v1113, %v860
        %v1148 = vsel %vm1134, %v1115, %v862
        %v1150 = vsel %vm1134, %v1117, %v864
        %v1152 = vsel %vm1134, %v1119, %v866
        %v1154 = vsel %vm1134, %v1121, %v868
        %v1156 = vsel %vm1134, %v1123, %v870
        %v1158 = vsel %vm1134, %v1125, %v872
        %v1160 = vsel %vm1134, %v1127, %v874
        %v1162 = vsel %vm1134, %v1129, %v876
        %v1164 = vsel %vm1134, %v1131, %v878
        %v1166 = vsel %vm1134, %v1133, %v880
        %vm1167 = vcmask 162816
        %v1169 = vsel %vm1167, %v1136, %v885
        %v1171 = vsel %vm1167, %v1138, %v887
        %v1173 = vsel %vm1167, %v1140, %v889
        %v1175 = vsel %vm1167, %v1142, %v891
        %v1177 = vsel %vm1167, %v1144, %v893
        %v1179 = vsel %vm1167, %v1146, %v895
        %v1181 = vsel %vm1167, %v1148, %v897
        %v1183 = vsel %vm1167, %v1150, %v899
        %v1185 = vsel %vm1167, %v1152, %v901
        %v1187 = vsel %vm1167, %v1154, %v903
        %v1189 = vsel %vm1167, %v1156, %v905
        %v1191 = vsel %vm1167, %v1158, %v907
        %v1193 = vsel %vm1167, %v1160, %v909
        %v1195 = vsel %vm1167, %v1162, %v911
        %v1197 = vsel %vm1167, %v1164, %v913
        %v1199 = vsel %vm1167, %v1166, %v915
        %vm1200 = vcmask 195584
        %v1202 = vsel %vm1200, %v1169, %v922
        %v1204 = vsel %vm1200, %v1171, %v924
        %v1206 = vsel %vm1200, %v1173, %v926
        %v1208 = vsel %vm1200, %v1175, %v928
        %v1210 = vsel %vm1200, %v1177, %v930
        %v1212 = vsel %vm1200, %v1179, %v932
        %v1214 = vsel %vm1200, %v1181, %v934
        %v1216 = vsel %vm1200, %v1183, %v936
        %v1218 = vsel %vm1200, %v1185, %v938
        %v1220 = vsel %vm1200, %v1187, %v940
        %v1222 = vsel %vm1200, %v1189, %v942
        %v1224 = vsel %vm1200, %v1191, %v944
        %v1226 = vsel %vm1200, %v1193, %v946
        %v1228 = vsel %vm1200, %v1195, %v948
        %v1230 = vsel %vm1200, %v1197, %v950
        %v1232 = vsel %vm1200, %v1199, %v952
        %vm1233 = vcmask 228352
        %v1235 = vsel %vm1233, %v1202, %v969
        %v1237 = vsel %vm1233, %v1204, %v971
        %v1239 = vsel %vm1233, %v1206, %v973
        %v1241 = vsel %vm1233, %v1208, %v975
        %v1243 = vsel %vm1233, %v1210, %v977
        %v1245 = vsel %vm1233, %v1212, %v979
        %v1247 = vsel %vm1233, %v1214, %v981
        %v1249 = vsel %vm1233, %v1216, %v983
        %v1251 = vsel %vm1233, %v1218, %v985
        %v1253 = vsel %vm1233, %v1220, %v987
        %v1255 = vsel %vm1233, %v1222, %v989
        %v1257 = vsel %vm1233, %v1224, %v991
        %v1259 = vsel %vm1233, %v1226, %v993
        %v1261 = vsel %vm1233, %v1228, %v995
        %v1263 = vsel %vm1233, %v1230, %v997
        %v1265 = vsel %vm1233, %v1232, %v999
        %vm1266 = vcmask 261120
        %v1268 = vsel %vm1266, %v1235, %v1004
        %v1270 = vsel %vm1266, %v1237, %v1006
        %v1272 = vsel %vm1266, %v1239, %v1008
        %v1274 = vsel %vm1266, %v1241, %v1010
        %v1276 = vsel %vm1266, %v1243, %v1012
        %v1278 = vsel %vm1266, %v1245, %v1014
        %v1280 = vsel %vm1266, %v1247, %v1016
        %v1282 = vsel %vm1266, %v1249, %v1018
        %v1284 = vsel %vm1266, %v1251, %v1020
        %v1286 = vsel %vm1266, %v1253, %v1022
        %v1288 = vsel %vm1266, %v1255, %v1024
        %v1290 = vsel %vm1266, %v1257, %v1026
        %v1292 = vsel %vm1266, %v1259, %v1028
        %v1294 = vsel %vm1266, %v1261, %v1030
        %v1296 = vsel %vm1266, %v1263, %v1032
        %v1298 = vsel %vm1266, %v1265, %v1034
        %v1299 = vld [vmem:[#allocation7] sm:$0xf]
        %v1300 = vld [vmem:[#allocation7 + $0x4] sm:$0xf]
        %v1301 = vld [vmem:[#allocation7 + $0x8] sm:$0xf]
        %v1302 = vld [vmem:[#allocation7 + $0xc] sm:$0xf]
        %v1303 = vld [vmem:[#allocation7 + $0x10] sm:$0x3]
        %v1309 = vunpack.c.l.b16 %v1299
        %v1310 = vunpack.c.l.b16 %v1300
        %v1311 = vunpack.c.l.b16 %v1301
        %v1312 = vunpack.c.l.b16 %v1302
        %v1313 = vunpack.c.l.b16 %v1303
        %v1314 = vpack.c.b16 %v1310, %v1309
        %v1315 = vpack.c.b16 %v1312, %v1311
        %v1316 = vpack.c.b16 %v1313, %v1313
        %vm1319 = vcmask 293888
        %v1320 = vsel %vm1319, %v1268, 0
        %v1322 = vsel %vm1319, %v1270, 0
        %v1324 = vsel %vm1319, %v1272, 0
        %v1326 = vsel %vm1319, %v1274, 0
        %v1328 = vsel %vm1319, %v1276, 0
        %v1330 = vsel %vm1319, %v1278, 0
        %v1332 = vsel %vm1319, %v1280, 0
        %v1334 = vsel %vm1319, %v1282, 0
        %v1336 = vsel %vm1319, %v1284, 0
        %v1338 = vsel %vm1319, %v1286, 0
        %v1340 = vsel %vm1319, %v1288, 0
        %v1342 = vsel %vm1319, %v1290, 0
        %v1344 = vsel %vm1319, %v1292, 0
        %v1346 = vsel %vm1319, %v1294, 0
        %v1348 = vsel %vm1319, %v1296, 0
        %v1350 = vsel %vm1319, %v1298, 0
        %vm1352 = vcmask 1041408
        %v1354 = vsel %vm1352, %v1316, 0
        %1356 = vmatprep.subr.bf16.mxu0 0
        %1357 = vmatpush1.bf16.msra.mxu0 %v1314
        %1358 = vmatprep.subr.bf16.mxu0 0
        %1359 = vmatpush1.bf16.msra.mxu0 %v1315
        %1360 = vmatprep.subr.bf16.mxu0 0
        %1361 = vmatpush1.bf16.msra.mxu0 %v1354
        %1362 = vmatprep.subr.bf16.mxu0 0
        %1363 = vmatpush1.bf16.msra.mxu0 0
        %1364 = vmatprep.subr.bf16.mxu0 0
        %1365 = vmatpush1.bf16.msra.mxu0 0
        %1366 = vmatprep.subr.bf16.mxu0 0
        %1367 = vmatpush1.bf16.msra.mxu0 0
        %1368 = vmatprep.subr.bf16.mxu0 0
        %1369 = vmatpush1.bf16.msra.mxu0 0
        %1370 = vmatprep.subr.bf16.mxu0 0
        %1371 = vmatpush1.bf16.msra.mxu0 0
        %1372 = vmatprep.subr.bf16.mxu0 0
        %1373 = vmatpush1.bf16.msra.mxu0 0
        %1374 = vmatprep.subr.bf16.mxu0 0
        %1375 = vmatpush1.bf16.msra.mxu0 0
        %1376 = vmatprep.subr.bf16.mxu0 0
        %1377 = vmatpush1.bf16.msra.mxu0 0
        %1378 = vmatprep.subr.bf16.mxu0 0
        %1379 = vmatpush1.bf16.msra.mxu0 0
        %1380 = vmatprep.subr.bf16.mxu0 0
        %1381 = vmatpush1.bf16.msra.mxu0 0
        %1382 = vmatprep.subr.bf16.mxu0 0
        %1383 = vmatpush1.bf16.msra.mxu0 0
        %1384 = vmatprep.subr.bf16.mxu0 0
        %1385 = vmatpush1.bf16.msra.mxu0 0
        %1386 = vmatprep.subr.bf16.mxu0 0
        %1387 = vmatpush1.bf16.msra.mxu0 0
        %1388 = vmatprep.mubr.bf16.mxu0 0
        %1389 = vmatmul.mubr.bf16.gmra.mrb[0].mxu0 %v1320
        %v1390 = vpop.f32.mrb[0].mxu0
        %v1391 = vadd.f32 0.0, %v1390
        %v1392 = vpop.f32.mrb[0].mxu0
        %v1393 = vpop.f32.mrb[0].mxu0
        %v1394 = vadd.f32 0.0, %v1393
        %v1395 = vpop.f32.mrb[0].mxu0
        %1396 = vmatprep.mubr.bf16.mxu0 0
        %1397 = vmatmul.mubr.bf16.gmra.mrb[0].mxu0 %v1322
        %v1398 = vpop.f32.mrb[0].mxu0
        %v1399 = vadd.f32 0.0, %v1398
        %v1400 = vpop.f32.mrb[0].mxu0
        %v1401 = vpop.f32.mrb[0].mxu0
        %v1402 = vadd.f32 0.0, %v1401
        %v1403 = vpop.f32.mrb[0].mxu0
        %1404 = vmatprep.mubr.bf16.mxu0 0
        %1405 = vmatmul.mubr.bf16.gmra.mrb[0].mxu0 %v1324
        %v1406 = vpop.f32.mrb[0].mxu0
        %v1407 = vadd.f32 0.0, %v1406
        %v1408 = vpop.f32.mrb[0].mxu0
        %v1409 = vpop.f32.mrb[0].mxu0
        %v1410 = vadd.f32 0.0, %v1409
        %v1411 = vpop.f32.mrb[0].mxu0
        %1412 = vmatprep.mubr.bf16.mxu0 0
        %1413 = vmatmul.mubr.bf16.gmra.mrb[0].mxu0 %v1326
        %v1414 = vpop.f32.mrb[0].mxu0
        %v1415 = vadd.f32 0.0, %v1414
        %v1416 = vpop.f32.mrb[0].mxu0
        %v1417 = vpop.f32.mrb[0].mxu0
        %v1418 = vadd.f32 0.0, %v1417
        %v1419 = vpop.f32.mrb[0].mxu0
        %1420 = vmatprep.mubr.bf16.mxu0 0
        %1421 = vmatmul.mubr.bf16.gmra.mrb[0].mxu0 %v1328
        %v1422 = vpop.f32.mrb[0].mxu0
        %v1423 = vadd.f32 0.0, %v1422
        %v1424 = vpop.f32.mrb[0].mxu0
        %v1425 = vpop.f32.mrb[0].mxu0
        %v1426 = vadd.f32 0.0, %v1425
        %v1427 = vpop.f32.mrb[0].mxu0
        %1428 = vmatprep.mubr.bf16.mxu0 0
        %1429 = vmatmul.mubr.bf16.gmra.mrb[0].mxu0 %v1330
        %v1430 = vpop.f32.mrb[0].mxu0
        %v1431 = vadd.f32 0.0, %v1430
        %v1432 = vpop.f32.mrb[0].mxu0
        %v1433 = vpop.f32.mrb[0].mxu0
        %v1434 = vadd.f32 0.0, %v1433
        %v1435 = vpop.f32.mrb[0].mxu0
        %1436 = vmatprep.mubr.bf16.mxu0 0
        %1437 = vmatmul.mubr.bf16.gmra.mrb[0].mxu0 %v1332
        %v1438 = vpop.f32.mrb[0].mxu0
        %v1439 = vadd.f32 0.0, %v1438
        %v1440 = vpop.f32.mrb[0].mxu0
        %v1441 = vpop.f32.mrb[0].mxu0
        %v1442 = vadd.f32 0.0, %v1441
        %v1443 = vpop.f32.mrb[0].mxu0
        %1444 = vmatprep.mubr.bf16.mxu0 0
        %1445 = vmatmul.mubr.bf16.gmra.mrb[0].mxu0 %v1334
        %v1446 = vpop.f32.mrb[0].mxu0
        %v1447 = vadd.f32 0.0, %v1446
        %v1448 = vpop.f32.mrb[0].mxu0
        %v1449 = vpop.f32.mrb[0].mxu0
        %v1450 = vadd.f32 0.0, %v1449
        %v1451 = vpop.f32.mrb[0].mxu0
        %1452 = vmatprep.mubr.bf16.mxu0 0
        %1453 = vmatmul.mubr.bf16.gmra.mrb[0].mxu0 %v1336
        %v1454 = vpop.f32.mrb[0].mxu0
        %v1455 = vadd.f32 0.0, %v1454
        %v1456 = vpop.f32.mrb[0].mxu0
        %v1457 = vpop.f32.mrb[0].mxu0
        %v1458 = vadd.f32 0.0, %v1457
        %v1459 = vpop.f32.mrb[0].mxu0
        %1460 = vmatprep.mubr.bf16.mxu0 0
        %1461 = vmatmul.mubr.bf16.gmra.mrb[0].mxu0 %v1338
        %v1462 = vpop.f32.mrb[0].mxu0
        %v1463 = vadd.f32 0.0, %v1462
        %v1464 = vpop.f32.mrb[0].mxu0
        %v1465 = vpop.f32.mrb[0].mxu0
        %v1466 = vadd.f32 0.0, %v1465
        %v1467 = vpop.f32.mrb[0].mxu0
        %1468 = vmatprep.mubr.bf16.mxu0 0
        %1469 = vmatmul.mubr.bf16.gmra.mrb[0].mxu0 %v1340
        %v1470 = vpop.f32.mrb[0].mxu0
        %v1471 = vadd.f32 0.0, %v1470
        %v1472 = vpop.f32.mrb[0].mxu0
        %v1473 = vpop.f32.mrb[0].mxu0
        %v1474 = vadd.f32 0.0, %v1473
        %v1475 = vpop.f32.mrb[0].mxu0
        %1476 = vmatprep.mubr.bf16.mxu0 0
        %1477 = vmatmul.mubr.bf16.gmra.mrb[0].mxu0 %v1342
        %v1478 = vpop.f32.mrb[0].mxu0
        %v1479 = vadd.f32 0.0, %v1478
        %v1480 = vpop.f32.mrb[0].mxu0
        %v1481 = vpop.f32.mrb[0].mxu0
        %v1482 = vadd.f32 0.0, %v1481
        %v1483 = vpop.f32.mrb[0].mxu0
        %1484 = vmatprep.mubr.bf16.mxu0 0
        %1485 = vmatmul.mubr.bf16.gmra.mrb[0].mxu0 %v1344
        %v1486 = vpop.f32.mrb[0].mxu0
        %v1487 = vadd.f32 0.0, %v1486
        %v1488 = vpop.f32.mrb[0].mxu0
        %v1489 = vpop.f32.mrb[0].mxu0
        %v1490 = vadd.f32 0.0, %v1489
        %v1491 = vpop.f32.mrb[0].mxu0
        %1492 = vmatprep.mubr.bf16.mxu0 0
        %1493 = vmatmul.mubr.bf16.gmra.mrb[0].mxu0 %v1346
        %v1494 = vpop.f32.mrb[0].mxu0
        %v1495 = vadd.f32 0.0, %v1494
        %v1496 = vpop.f32.mrb[0].mxu0
        %v1497 = vpop.f32.mrb[0].mxu0
        %v1498 = vadd.f32 0.0, %v1497
        %v1499 = vpop.f32.mrb[0].mxu0
        %1500 = vmatprep.mubr.bf16.mxu0 0
        %1501 = vmatmul.mubr.bf16.gmra.mrb[0].mxu0 %v1348
        %v1502 = vpop.f32.mrb[0].mxu0
        %v1503 = vadd.f32 0.0, %v1502
        %v1504 = vpop.f32.mrb[0].mxu0
        %v1505 = vpop.f32.mrb[0].mxu0
        %v1506 = vadd.f32 0.0, %v1505
        %v1507 = vpop.f32.mrb[0].mxu0
        %1508 = vmatprep.mubr.bf16.mxu0 0
        %1509 = vmatmul.mubr.bf16.gmra.mrb[0].mxu0 %v1350
        %v1510 = vpop.f32.mrb[0].mxu0
        %v1511 = vadd.f32 0.0, %v1510
        %v1512 = vpop.f32.mrb[0].mxu0
        %v1513 = vpop.f32.mrb[0].mxu0
        %v1514 = vadd.f32 0.0, %v1513
        %v1515 = vpop.f32.mrb[0].mxu0
        %1516 = vdwg.mxu0
        %v1517 = vpack.c.bf16 %v1394, %v1391
        %v1518 = vpack.c.bf16 %v1402, %v1399
        %v1519 = vpack.c.bf16 %v1410, %v1407
        %v1520 = vpack.c.bf16 %v1418, %v1415
        %v1521 = vpack.c.bf16 %v1426, %v1423
        %v1522 = vpack.c.bf16 %v1434, %v1431
        %v1523 = vpack.c.bf16 %v1442, %v1439
        %v1524 = vpack.c.bf16 %v1450, %v1447
        %v1525 = vpack.c.bf16 %v1458, %v1455
        %v1526 = vpack.c.bf16 %v1466, %v1463
        %v1527 = vpack.c.bf16 %v1474, %v1471
        %v1528 = vpack.c.bf16 %v1482, %v1479
        %v1529 = vpack.c.bf16 %v1490, %v1487
        %v1530 = vpack.c.bf16 %v1498, %v1495
        %v1531 = vpack.c.bf16 %v1506, %v1503
        %v1532 = vpack.c.bf16 %v1514, %v1511
        %v1549 = vunpack.c.l.b16 %v1517
        %v1550 = vunpack.c.h.b16 %v1517
        %v1551 = vunpack.c.l.b16 %v1518
        %v1552 = vunpack.c.h.b16 %v1518
        %v1553 = vunpack.c.l.b16 %v1519
        %v1554 = vunpack.c.h.b16 %v1519
        %v1555 = vunpack.c.l.b16 %v1520
        %v1556 = vunpack.c.h.b16 %v1520
        %v1557 = vunpack.c.l.b16 %v1521
        %v1558 = vunpack.c.h.b16 %v1521
        %v1559 = vunpack.c.l.b16 %v1522
        %v1560 = vunpack.c.h.b16 %v1522
        %v1561 = vunpack.c.l.b16 %v1523
        %v1562 = vunpack.c.h.b16 %v1523
        %v1563 = vunpack.c.l.b16 %v1524
        %v1564 = vunpack.c.h.b16 %v1524
        %v1565 = vunpack.c.l.b16 %v1525
        %v1566 = vunpack.c.h.b16 %v1525
        %v1567 = vunpack.c.l.b16 %v1526
        %v1568 = vunpack.c.h.b16 %v1526
        %v1569 = vunpack.c.l.b16 %v1527
        %v1570 = vunpack.c.h.b16 %v1527
        %v1571 = vunpack.c.l.b16 %v1528
        %v1572 = vunpack.c.h.b16 %v1528
        %v1573 = vunpack.c.l.b16 %v1529
        %v1574 = vunpack.c.h.b16 %v1529
        %v1575 = vunpack.c.l.b16 %v1530
        %v1576 = vunpack.c.h.b16 %v1530
        %v1577 = vunpack.c.l.b16 %v1531
        %v1578 = vunpack.c.h.b16 %v1531
        %v1579 = vunpack.c.l.b16 %v1532
        %v1580 = vunpack.c.h.b16 %v1532
        %v1581 = vpack.c.b16 %v1549, %v1549
        %v1582 = vpack.c.b16 %v1550, %v1550
        %v1583 = vpack.c.b16 %v1551, %v1551
        %v1584 = vpack.c.b16 %v1552, %v1552
        %v1585 = vpack.c.b16 %v1553, %v1553
        %v1586 = vpack.c.b16 %v1554, %v1554
        %v1587 = vpack.c.b16 %v1555, %v1555
        %v1588 = vpack.c.b16 %v1556, %v1556
        %v1589 = vpack.c.b16 %v1557, %v1557
        %v1590 = vpack.c.b16 %v1558, %v1558
        %v1591 = vpack.c.b16 %v1559, %v1559
        %v1592 = vpack.c.b16 %v1560, %v1560
        %v1593 = vpack.c.b16 %v1561, %v1561
        %v1594 = vpack.c.b16 %v1562, %v1562
        %v1595 = vpack.c.b16 %v1563, %v1563
        %v1596 = vpack.c.b16 %v1564, %v1564
        %v1597 = vpack.c.b16 %v1565, %v1565
        %v1598 = vpack.c.b16 %v1566, %v1566
        %v1599 = vpack.c.b16 %v1567, %v1567
        %v1600 = vpack.c.b16 %v1568, %v1568
        %v1601 = vpack.c.b16 %v1569, %v1569
        %v1602 = vpack.c.b16 %v1570, %v1570
        %v1603 = vpack.c.b16 %v1571, %v1571
        %v1604 = vpack.c.b16 %v1572, %v1572
        %v1605 = vpack.c.b16 %v1573, %v1573
        %v1606 = vpack.c.b16 %v1574, %v1574
        %v1607 = vpack.c.b16 %v1575, %v1575
        %v1608 = vpack.c.b16 %v1576, %v1576
        %v1609 = vpack.c.b16 %v1577, %v1577
        %v1610 = vpack.c.b16 %v1578, %v1578
        %v1611 = vpack.c.b16 %v1579, %v1579
        %v1612 = vpack.c.b16 %v1580, %v1580
        %1645 = vst [vmem:[%s298] sm:$0xf] %v1581
        %1646 = vst [vmem:[%s298 + $0x4] sm:$0xf] %v1582
        %1647 = vst [vmem:[%s298 + $0x8] sm:$0xf] %v1583
        %1648 = vst [vmem:[%s298 + $0xc] sm:$0xf] %v1584
        %1649 = vst [vmem:[%s298 + $0x10] sm:$0xf] %v1585
        %1650 = vst [vmem:[%s298 + $0x14] sm:$0xf] %v1586
        %1651 = vst [vmem:[%s298 + $0x18] sm:$0xf] %v1587
        %1652 = vst [vmem:[%s298 + $0x1c] sm:$0xf] %v1588
        %1653 = vst [vmem:[%s298 + $0x20] sm:$0xf] %v1589
        %1654 = vst [vmem:[%s298 + $0x24] sm:$0xf] %v1590
        %1655 = vst [vmem:[%s298 + $0x28] sm:$0xf] %v1591
        %1656 = vst [vmem:[%s298 + $0x2c] sm:$0xf] %v1592
        %1657 = vst [vmem:[%s298 + $0x30] sm:$0xf] %v1593
        %1658 = vst [vmem:[%s298 + $0x34] sm:$0xf] %v1594
        %1659 = vst [vmem:[%s298 + $0x38] sm:$0xf] %v1595
        %1660 = vst [vmem:[%s298 + $0x3c] sm:$0xf] %v1596
        %1661 = vst [vmem:[%s298 + $0x40] sm:$0xf] %v1597
        %1662 = vst [vmem:[%s298 + $0x44] sm:$0xf] %v1598
        %1663 = vst [vmem:[%s298 + $0x48] sm:$0xf] %v1599
        %1664 = vst [vmem:[%s298 + $0x4c] sm:$0xf] %v1600
        %1665 = vst [vmem:[%s298 + $0x50] sm:$0xf] %v1601
        %1666 = vst [vmem:[%s298 + $0x54] sm:$0xf] %v1602
        %1667 = vst [vmem:[%s298 + $0x58] sm:$0xf] %v1603
        %1668 = vst [vmem:[%s298 + $0x5c] sm:$0xf] %v1604
        %1669 = vst [vmem:[%s298 + $0x60] sm:$0xf] %v1605
        %1670 = vst [vmem:[%s298 + $0x64] sm:$0xf] %v1606
        %1671 = vst [vmem:[%s298 + $0x68] sm:$0xf] %v1607
        %1672 = vst [vmem:[%s298 + $0x6c] sm:$0xf] %v1608
        %1673 = vst [vmem:[%s298 + $0x70] sm:$0xf] %v1609
        %1674 = vst [vmem:[%s298 + $0x74] sm:$0xf] %v1610
        %1675 = vst [vmem:[%s298 + $0x78] sm:$0xf] %v1611
        %1676 = vst [vmem:[%s298 + $0x7c] sm:$0xf] %v1612
        %v1677 = vadd.f32 %v1391, %v1394
        %v1678 = vadd.f32 %v1677, %v1399
        %v1679 = vadd.f32 %v1678, %v1402
        %v1680 = vadd.f32 %v1679, %v1407
        %v1681 = vadd.f32 %v1680, %v1410
        %v1682 = vadd.f32 %v1681, %v1415
        %v1683 = vadd.f32 %v1682, %v1418
        %v1684 = vadd.f32 %v1683, %v1423
        %v1685 = vadd.f32 %v1684, %v1426
        %v1686 = vadd.f32 %v1685, %v1431
        %v1687 = vadd.f32 %v1686, %v1434
        %v1688 = vadd.f32 %v1687, %v1439
        %v1689 = vadd.f32 %v1688, %v1442
        %v1690 = vadd.f32 %v1689, %v1447
        %v1691 = vadd.f32 %v1690, %v1450
        %v1692 = vadd.f32 %v1691, %v1455
        %v1693 = vadd.f32 %v1692, %v1458
        %v1694 = vadd.f32 %v1693, %v1463
        %v1695 = vadd.f32 %v1694, %v1466
        %v1696 = vadd.f32 %v1695, %v1471
        %v1697 = vadd.f32 %v1696, %v1474
        %v1698 = vadd.f32 %v1697, %v1479
        %v1699 = vadd.f32 %v1698, %v1482
        %v1700 = vadd.f32 %v1699, %v1487
        %v1701 = vadd.f32 %v1700, %v1490
        %v1702 = vadd.f32 %v1701, %v1495
        %v1703 = vadd.f32 %v1702, %v1498
        %v1704 = vadd.f32 %v1703, %v1503
        %v1705 = vadd.f32 %v1704, %v1506
        %v1706 = vadd.f32 %v1705, %v1511
        %v1707 = vadd.f32 %v1706, %v1514
        %v1708 = vrot.slane %v1707, 4
        %v1709 = vadd.f32 %v1707, %v1708
        %v1710 = vrot.slane %v1709, 2
        %v1711 = vadd.f32 %v1709, %v1710
        %v1712 = vrot.slane %v1711, 1
        %v1713 = vadd.f32 %v1711, %v1712
        %v1714 = vmul.f32 %v1391, %v1391
        %v1715 = vmul.f32 %v1394, %v1394
        %v1716 = vmul.f32 %v1399, %v1399
        %v1717 = vmul.f32 %v1402, %v1402
        %v1718 = vmul.f32 %v1407, %v1407
        %v1719 = vmul.f32 %v1410, %v1410
        %v1720 = vmul.f32 %v1415, %v1415
        %v1721 = vmul.f32 %v1418, %v1418
        %v1722 = vmul.f32 %v1423, %v1423
        %v1723 = vmul.f32 %v1426, %v1426
        %v1724 = vmul.f32 %v1431, %v1431
        %v1725 = vmul.f32 %v1434, %v1434
        %v1726 = vmul.f32 %v1439, %v1439
        %v1727 = vmul.f32 %v1442, %v1442
        %v1728 = vmul.f32 %v1447, %v1447
        %v1729 = vmul.f32 %v1450, %v1450
        %v1730 = vmul.f32 %v1455, %v1455
        %v1731 = vmul.f32 %v1458, %v1458
        %v1732 = vmul.f32 %v1463, %v1463
        %v1733 = vmul.f32 %v1466, %v1466
        %v1734 = vmul.f32 %v1471, %v1471
        %v1735 = vmul.f32 %v1474, %v1474
        %v1736 = vmul.f32 %v1479, %v1479
        %v1737 = vmul.f32 %v1482, %v1482
        %v1738 = vmul.f32 %v1487, %v1487
        %v1739 = vmul.f32 %v1490, %v1490
        %v1740 = vmul.f32 %v1495, %v1495
        %v1741 = vmul.f32 %v1498, %v1498
        %v1742 = vmul.f32 %v1503, %v1503
        %v1743 = vmul.f32 %v1506, %v1506
        %v1744 = vmul.f32 %v1511, %v1511
        %v1745 = vmul.f32 %v1514, %v1514
        %v1746 = vadd.f32 %v1714, %v1715
        %v1747 = vadd.f32 %v1746, %v1716
        %v1748 = vadd.f32 %v1747, %v1717
        %v1749 = vadd.f32 %v1748, %v1718
        %v1750 = vadd.f32 %v1749, %v1719
        %v1751 = vadd.f32 %v1750, %v1720
        %v1752 = vadd.f32 %v1751, %v1721
        %v1753 = vadd.f32 %v1752, %v1722
        %v1754 = vadd.f32 %v1753, %v1723
        %v1755 = vadd.f32 %v1754, %v1724
        %v1756 = vadd.f32 %v1755, %v1725
        %v1757 = vadd.f32 %v1756, %v1726
        %v1758 = vadd.f32 %v1757, %v1727
        %v1759 = vadd.f32 %v1758, %v1728
        %v1760 = vadd.f32 %v1759, %v1729
        %v1761 = vadd.f32 %v1760, %v1730
        %v1762 = vadd.f32 %v1761, %v1731
        %v1763 = vadd.f32 %v1762, %v1732
        %v1764 = vadd.f32 %v1763, %v1733
        %v1765 = vadd.f32 %v1764, %v1734
        %v1766 = vadd.f32 %v1765, %v1735
        %v1767 = vadd.f32 %v1766, %v1736
        %v1768 = vadd.f32 %v1767, %v1737
        %v1769 = vadd.f32 %v1768, %v1738
        %v1770 = vadd.f32 %v1769, %v1739
        %v1771 = vadd.f32 %v1770, %v1740
        %v1772 = vadd.f32 %v1771, %v1741
        %v1773 = vadd.f32 %v1772, %v1742
        %v1774 = vadd.f32 %v1773, %v1743
        %v1775 = vadd.f32 %v1774, %v1744
        %v1776 = vadd.f32 %v1775, %v1745
        %v1777 = vrot.slane %v1776, 4
        %v1778 = vadd.f32 %v1776, %v1777
        %v1779 = vrot.slane %v1778, 2
        %v1780 = vadd.f32 %v1778, %v1779
        %v1781 = vrot.slane %v1780, 1
        %v1782 = vadd.f32 %v1780, %v1781
        %vm1783 = vcmask 1040384
        %v1784 = vsel %vm1783, %v1713, %v1782
        %1785 = vst [vmem:[%s305] sm:$0x3] %v1784
        %s1786 = sand.u32 %s127, 1
        %s1787 = scalar_lea.sflag [#allocation4], %s1786
        %s1788 = sand.u32 %s127, 1
        %s1789 = smul.addr %s1788, 128
        %s1790 = scalar_lea.vmem [#allocation8], %s1789
        %s1791 = sand.u32 %s155, 1
        %s1792 = scalar_lea.sflag [#allocation10], %s1791
        %s1793 = sand.u32 %s155, 1
        %s1794 = smul.addr %s1793, 2
        %s1795 = scalar_lea.vmem [#allocation9], %s1794
        // Predicated region
        $region45: #{cnn_block.2} parent=31 // pred_check
          %p1796 = pneg %p137
        $region46: #{cnn_block.2} parent=31 // pred_check_branch
          %1798 = sbr.rel (%p1796) target = $region48
        $region47: #{cnn_block.2} parent=31 // pred_region
          %s1799 = smul.u32 16, %s33
          %s1801 = ssub.s32 2048, 2048
          %1802 = vsyncadd %s1787, %s1801
          %s1803 = smul.addr %s1799, 2
          %s1804 = smul.addr %s32, 32
          %s1805 = sadd.s32 %s1803, %s1804
          %s1806 = smul.addr %s1805, 64
          %s1807 = scalar_lea.hbm %s3, %s1806
          %s1808 = sshll.u32 %s1790, 4
          %s1809 = int_to_ptr.vmem [resolvable:$true] %s1808
          %1814 = dma.vmem_to_hbm [thread:$0]  %s1809, 2048, %s1807, %s1787, 64, 64, 4
        $region48: #{cnn_block.2} parent=31 // pred_fallthru
          _
        // Predicated region
        $region49: #{cnn_block.2} parent=31 // pred_check
          %p1815 = pneg %p165
        $region50: #{cnn_block.2} parent=31 // pred_check_branch
          %1817 = sbr.rel (%p1815) target = $region52
        $region51: #{cnn_block.2} parent=31 // pred_region
          %s1819 = ssub.s32 32, 32
          %1820 = vsyncadd %s1792, %s1819
          %s1821 = sadd.s32 %s33, %s32
          %s1822 = smul.addr %s1821, 32
          %s1823 = scalar_lea.hbm %s4, %s1822
          %s1825 = sshll.u32 %s1795, 4
          %s1826 = int_to_ptr.vmem [resolvable:$true] %s1825
          %1828 = dma.vmem_to_hbm [thread:$0]  %s1826, 32, %s1823, %s1792
        $region52: #{cnn_block.2} parent=31 // pred_fallthru
          _
      $region32: #{cnn_block.2} parent=5 // pred_fallthru
        _
      %p1829 = scmp.le.s32.totalorder 2, %s23
      // Predicated region
      $region53: #{cnn_block.2} parent=5 // pred_check
        %p1830 = pneg %p1829
      $region54: #{cnn_block.2} parent=5 // pred_check_branch
        %1832 = sbr.rel (%p1830) target = $region56
      $region55: #{cnn_block.2} parent=5 // pred_region
        %s1833 = ssub.s32 %s23, 2
        // Predicated region
        $region57: #{cnn_block.2} parent=55 // pred_check
          %p1834 = pneg %p143
        $region58: #{cnn_block.2} parent=55 // pred_check_branch
          %1836 = sbr.rel (%p1834) target = $region60
        $region59: #{cnn_block.2} parent=55 // pred_region
          %s1837 = sand.u32 %s128, 1
          %s1838 = scalar_lea.sflag [#allocation4], %s1837
          %s1839 = sand.u32 %s128, 1
          %s1840 = smul.addr %s1839, 128
          %s1841 = scalar_lea.vmem [#allocation8], %s1840
          %1842 = dma.done %s1838, 2048
        $region60: #{cnn_block.2} parent=55 // pred_fallthru
          _
        // Predicated region
        $region61: #{cnn_block.2} parent=55 // pred_check
          %p1843 = pneg %p171
        $region62: #{cnn_block.2} parent=55 // pred_check_branch
          %1845 = sbr.rel (%p1843) target = $region64
        $region63: #{cnn_block.2} parent=55 // pred_region
          %s1846 = sand.u32 %s156, 1
          %s1847 = scalar_lea.sflag [#allocation10], %s1846
          %s1848 = sand.u32 %s156, 1
          %s1849 = smul.addr %s1848, 2
          %s1850 = scalar_lea.vmem [#allocation9], %s1849
          %1851 = dma.done %s1847, 32
        $region64: #{cnn_block.2} parent=55 // pred_fallthru
          _
      $region56: #{cnn_block.2} parent=5 // pred_fallthru
        _
    $region6: #{cnn_block.2} parent=1 // loop_footer
      %s27 = sadd.s32 1, %s23
    $region7: #{cnn_block.2} parent=1 // loop_footer_branch
      %22 = sbr.rel target = $region3
    $region8: #{cnn_block.2} parent=1 // loop_exit
      _
    %1852 = vsyncpa [#allocation3], 1
    %s1853 = scalar_lea.sflag [#allocation3], 1
    %1854 = vsyncpa %s1853, 1
    %1855 = vsyncpa [#allocation6], 1
    %s1856 = scalar_lea.sflag [#allocation6], 1
    %1857 = vsyncpa %s1856, 1
    %1858 = vsyncpa [#allocation4], 1
    %s1859 = scalar_lea.sflag [#allocation4], 1
    %1860 = vsyncpa %s1859, 1
    %1861 = vsyncpa [#allocation10], 1
    %s1862 = scalar_lea.sflag [#allocation10], 1
    %1863 = vsyncpa %s1862, 1

</llo_original>
